<compile_context>
chip_gen: v7x
topology: tpu7x:2x2x1
jax: 0.10.0
libtpu: 0.0.40
codegen_flags: <defaults>
</compile_context>

<pallas_src>
import jax
import jax.numpy as jnp
from jax.experimental import pallas as pl
from jax.experimental.pallas import tpu as pltpu

INPUT_DIM = 256
HIDDEN_DIM = 512
HEADS_DIM = 64 + 64 + 32 + 32   # 192 -- folded away at init (W_fused = Wh @ Wo)
OUTPUT_DIM = 128

MAX_TILE_B = 512   # safe within the default scoped VMEM on v5e/v6e/v7x


def game_ai_kernel(x_ref, w1_ref, b1_ref, w2_ref, b2_ref, wf_ref, bf_ref, out_ref):
    # Encoder layer 1: bf16 MXU matmul with f32 accumulation; bias + ReLU in bf16.
    h1 = jnp.dot(x_ref[...], w1_ref[...], preferred_element_type=jnp.float32)
    h1 = jnp.maximum(h1.astype(jnp.bfloat16) + b1_ref[...], 0.0)

    # Encoder layer 2 (Dropout is identity in inference).
    h2 = jnp.dot(h1, w2_ref[...], preferred_element_type=jnp.float32)
    h2 = jnp.maximum(h2.astype(jnp.bfloat16) + b2_ref[...], 0.0)

    # Fused heads + output layer: cat(heads) @ Wo + bo == h2 @ (Wh @ Wo) + (bh @ Wo + bo).
    out = jnp.dot(h2, wf_ref[...], preferred_element_type=jnp.float32)
    out_ref[...] = (out + bf_ref[...]).astype(out_ref.dtype)


def _round_up(x: int, m: int) -> int:
    return ((x + m - 1) // m) * m


def _pick_tile_b(B: int) -> int:
    """Multiple-of-8 batch tile, capped at MAX_TILE_B; >=2 grid steps when B >= 16."""
    if B < 16:
        return _round_up(max(B, 1), 8)        # single small tile; nothing useful to split
    # At least 2 "parallel" grid steps so both v7x TensorCores get work; cap the
    # tile at 512 rows so VMEM stays within default scoped limits on all chips.
    half = _round_up((B + 1) // 2, 8)
    return min(MAX_TILE_B, half)


def game_ai_forward(x, kernel_params, *, tile_b=None):
    B = x.shape[0]
    if tile_b is None:
        tile_b = _pick_tile_b(B)
    assert tile_b % 8 == 0 and tile_b <= MAX_TILE_B

    w1, b1, w2, b2, wf, bf = kernel_params

    # x is the dominant streamed operand: cast to bf16 in the wrapper and zero-pad
    # the batch to a clean multiple of tile_b (padded rows are computed, discarded).
    num_tiles = pl.cdiv(B, tile_b)
    padded_b = num_tiles * tile_b
    x_bf16 = x.astype(jnp.bfloat16)
    if padded_b != B:
        x_bf16 = jnp.pad(x_bf16, ((0, padded_b - B), (0, 0)))

    # Constant index_maps -> weights/biases stay resident in VMEM across the grid.
    resident = lambda shape: pl.BlockSpec(shape, lambda i: (0, 0))

    out = pl.pallas_call(
        game_ai_kernel,
        out_shape=jax.ShapeDtypeStruct((padded_b, OUTPUT_DIM), jnp.float32),
        grid_spec=pltpu.PrefetchScalarGridSpec(
            num_scalar_prefetch=0,
            grid=(num_tiles,),
            in_specs=[
                pl.BlockSpec((tile_b, INPUT_DIM), lambda i: (i, 0)),   # x tile (bf16)
                resident((INPUT_DIM, HIDDEN_DIM)),                     # W1 (bf16)
                resident((1, HIDDEN_DIM)),                             # b1 (bf16)
                resident((HIDDEN_DIM, HIDDEN_DIM)),                    # W2 (bf16)
                resident((1, HIDDEN_DIM)),                             # b2 (bf16)
                resident((HIDDEN_DIM, OUTPUT_DIM)),                    # W_fused (bf16)
                resident((1, OUTPUT_DIM)),                             # b_fused (f32)
            ],
            out_specs=pl.BlockSpec((tile_b, OUTPUT_DIM), lambda i: (i, 0)),
        ),
        compiler_params=pltpu.CompilerParams(
            dimension_semantics=("parallel",),
        ),
    )(x_bf16, w1, b1, w2, b2, wf, bf)

    return out[:B] if padded_b != B else out


def init_params(key):
    """Deterministic init mimicking torch.nn.Linear default U[-1/sqrt(fan_in), +1/sqrt(fan_in)].
    Weights stored as (in_features, out_features).

    Returns:
      kernel_params: (w1_bf16, b1_bf16, w2_bf16, b2_bf16, w_fused_bf16, b_fused_f32)
      ref_params:    full-precision unfused params for the pure-JAX reference.
    """
    def linear(key, fan_in, fan_out):
        kw, kb = jax.random.split(key)
        bound = 1.0 / jnp.sqrt(fan_in)
        w = jax.random.uniform(kw, (fan_in, fan_out), jnp.float32, -bound, bound)
        b = jax.random.uniform(kb, (1, fan_out), jnp.float32, -bound, bound)
        return w, b

    keys = jax.random.split(key, 7)
    w1, b1 = linear(keys[0], INPUT_DIM, HIDDEN_DIM)
    w2, b2 = linear(keys[1], HIDDEN_DIM, HIDDEN_DIM)
    w_gd, b_gd = linear(keys[2], HIDDEN_DIM, 64)   # game_design_head
    w_cg, b_cg = linear(keys[3], HIDDEN_DIM, 64)   # code_generation_head
    w_op, b_op = linear(keys[4], HIDDEN_DIM, 32)   # optimization_head
    w_cr, b_cr = linear(keys[5], HIDDEN_DIM, 32)   # creativity_head
    wo, bo = linear(keys[6], HEADS_DIM, OUTPUT_DIM)

    # torch.cat order = [game_design, code_gen, optimization, creativity]
    wh = jnp.concatenate([w_gd, w_cg, w_op, w_cr], axis=1)   # (512, 192)
    bh = jnp.concatenate([b_gd, b_cg, b_op, b_cr], axis=1)   # (1, 192)

    # Algebraic fusion: no nonlinearity between the heads and the output layer.
    w_fused = wh @ wo                  # (512, 128)
    b_fused = bh @ wo + bo             # (1, 128)

    kernel_params = (
        w1.astype(jnp.bfloat16), b1.astype(jnp.bfloat16),
        w2.astype(jnp.bfloat16), b2.astype(jnp.bfloat16),
        w_fused.astype(jnp.bfloat16), b_fused,
    )
    ref_params = (w1, b1, w2, b2, wh, bh, wo, bo)
    return kernel_params, ref_params


def reference_forward(x, ref_params):
    """Pure-JAX f32 reference reproducing the original module's math (unfused heads)."""
    w1, b1, w2, b2, wh, bh, wo, bo = ref_params
    h1 = jnp.maximum(x @ w1 + b1, 0.0)
    h2 = jnp.maximum(h1 @ w2 + b2, 0.0)
    combined = h2 @ wh + bh            # == torch.cat of the 4 heads
    return combined @ wo + bo


if __name__ == "__main__":
    key = jax.random.PRNGKey(0)
    k_params, k_x = jax.random.split(key)

    kernel_params, ref_params = init_params(k_params)

    # Small demo batch chosen to exercise padding (20 -> 32) and a 2-step grid.
    B = 20
    x = jax.random.normal(k_x, (B, INPUT_DIM), dtype=jnp.float32)

    out = game_ai_forward(x, kernel_params)
    out = jax.block_until_ready(out)

    ref = reference_forward(x, ref_params)
    assert out.shape == (B, OUTPUT_DIM)
    # bf16 weights/activations with f32 accumulation vs full-f32 reference.
    assert jnp.allclose(out, ref, atol=5e-2, rtol=5e-2), "mismatch vs f32 reference"

    print("KERNEL_OK")
</pallas_src>

<mosaic_0001>
module attributes {stable_mosaic.version = 11 : i64} {
  func.func @game_ai_kernel(%arg0: i32, %arg1: memref<16x256xbf16, #tpu.memory_space<vmem>>, %arg2: memref<256x512xbf16, #tpu.memory_space<vmem>>, %arg3: memref<1x512xbf16, #tpu.memory_space<vmem>>, %arg4: memref<512x512xbf16, #tpu.memory_space<vmem>>, %arg5: memref<1x512xbf16, #tpu.memory_space<vmem>>, %arg6: memref<512x128xbf16, #tpu.memory_space<vmem>>, %arg7: memref<1x128xf32, #tpu.memory_space<vmem>>, %arg8: memref<16x128xf32, #tpu.memory_space<vmem>>) attributes {dimension_semantics = [#tpu.dimension_semantics<parallel>], iteration_bounds = array<i64: 2>, scalar_prefetch = 0 : i64, scratch_operands = 0 : i64, tpu.core_type = #tpu.core_type<tc>, window_params = [{transform_indices = @transform_0, window_bounds = array<i64: 16, 256>}, {pipeline_mode = #tpu.pipeline_mode<synchronous>, transform_indices = @transform_1, window_bounds = array<i64: 256, 512>}, {pipeline_mode = #tpu.pipeline_mode<synchronous>, transform_indices = @transform_2, window_bounds = array<i64: 1, 512>}, {pipeline_mode = #tpu.pipeline_mode<synchronous>, transform_indices = @transform_3, window_bounds = array<i64: 512, 512>}, {pipeline_mode = #tpu.pipeline_mode<synchronous>, transform_indices = @transform_4, window_bounds = array<i64: 1, 512>}, {pipeline_mode = #tpu.pipeline_mode<synchronous>, transform_indices = @transform_5, window_bounds = array<i64: 512, 128>}, {pipeline_mode = #tpu.pipeline_mode<synchronous>, transform_indices = @transform_6, window_bounds = array<i64: 1, 128>}, {transform_indices = @transform_7, window_bounds = array<i64: 16, 128>}]} {
    %c0 = arith.constant 0 : index
    %c0_0 = arith.constant 0 : index
    %0 = vector.load %arg1[%c0, %c0_0] : memref<16x256xbf16, #tpu.memory_space<vmem>>, vector<16x256xbf16>
    %c0_1 = arith.constant 0 : index
    %c0_2 = arith.constant 0 : index
    %1 = vector.load %arg2[%c0_1, %c0_2] : memref<256x512xbf16, #tpu.memory_space<vmem>>, vector<256x512xbf16>
    %cst = arith.constant dense<0.000000e+00> : vector<16x512xf32>
    %2 = tpu.matmul %0, %1, %cst {dimension_numbers = #tpu.dot_dimension_numbers<[1], [0], [0], [1], [0, 0, 1, 1], [], []>} : vector<16x256xbf16>, vector<256x512xbf16>, vector<16x512xf32> -> vector<16x512xf32>
    %3 = arith.truncf %2 : vector<16x512xf32> to vector<16x512xbf16>
    %c0_3 = arith.constant 0 : index
    %c0_4 = arith.constant 0 : index
    %4 = vector.load %arg3[%c0_3, %c0_4] : memref<1x512xbf16, #tpu.memory_space<vmem>>, vector<1x512xbf16>
    %5 = vector.broadcast %4 : vector<1x512xbf16> to vector<16x512xbf16>
    %6 = arith.addf %3, %5 : vector<16x512xbf16>
    %cst_5 = arith.constant 0.000000e+00 : bf16
    %7 = vector.broadcast %cst_5 : bf16 to vector<16x512xbf16>
    %8 = arith.maximumf %6, %7 : vector<16x512xbf16>
    %c0_6 = arith.constant 0 : index
    %c0_7 = arith.constant 0 : index
    %9 = vector.load %arg4[%c0_6, %c0_7] : memref<512x512xbf16, #tpu.memory_space<vmem>>, vector<512x512xbf16>
    %cst_8 = arith.constant dense<0.000000e+00> : vector<16x512xf32>
    %10 = tpu.matmul %8, %9, %cst_8 {dimension_numbers = #tpu.dot_dimension_numbers<[1], [0], [0], [1], [0, 0, 1, 1], [], []>} : vector<16x512xbf16>, vector<512x512xbf16>, vector<16x512xf32> -> vector<16x512xf32>
    %11 = arith.truncf %10 : vector<16x512xf32> to vector<16x512xbf16>
    %c0_9 = arith.constant 0 : index
    %c0_10 = arith.constant 0 : index
    %12 = vector.load %arg5[%c0_9, %c0_10] : memref<1x512xbf16, #tpu.memory_space<vmem>>, vector<1x512xbf16>
    %13 = vector.broadcast %12 : vector<1x512xbf16> to vector<16x512xbf16>
    %14 = arith.addf %11, %13 : vector<16x512xbf16>
    %cst_11 = arith.constant 0.000000e+00 : bf16
    %15 = vector.broadcast %cst_11 : bf16 to vector<16x512xbf16>
    %16 = arith.maximumf %14, %15 : vector<16x512xbf16>
    %c0_12 = arith.constant 0 : index
    %c0_13 = arith.constant 0 : index
    %17 = vector.load %arg6[%c0_12, %c0_13] : memref<512x128xbf16, #tpu.memory_space<vmem>>, vector<512x128xbf16>
    %cst_14 = arith.constant dense<0.000000e+00> : vector<16x128xf32>
    %18 = tpu.matmul %16, %17, %cst_14 {dimension_numbers = #tpu.dot_dimension_numbers<[1], [0], [0], [1], [0, 0, 1, 1], [], []>} : vector<16x512xbf16>, vector<512x128xbf16>, vector<16x128xf32> -> vector<16x128xf32>
    %c0_15 = arith.constant 0 : index
    %c0_16 = arith.constant 0 : index
    %19 = vector.load %arg7[%c0_15, %c0_16] : memref<1x128xf32, #tpu.memory_space<vmem>>, vector<1x128xf32>
    %20 = vector.broadcast %19 : vector<1x128xf32> to vector<16x128xf32>
    %21 = arith.addf %18, %20 : vector<16x128xf32>
    %c0_17 = arith.constant 0 : index
    %c0_18 = arith.constant 0 : index
    %22 = vector.load %arg8[%c0_17, %c0_18] : memref<16x128xf32, #tpu.memory_space<vmem>>, vector<16x128xf32>
    tpu.vector_store %arg8[%c0_17, %c0_18], %21 {strides = array<i32>} : memref<16x128xf32, #tpu.memory_space<vmem>>, vector<16x128xf32>,
    return
  }
  func.func @transform_0(%arg0: i32) -> (i32, i32) {
    %c0_i32 = arith.constant 0 : i32
    %c0_i32_0 = arith.constant 0 : i32
    return %arg0, %c0_i32 : i32, i32
  }
  func.func @transform_1(%arg0: i32) -> (i32, i32) {
    %c0_i32 = arith.constant 0 : i32
    %c0_i32_0 = arith.constant 0 : i32
    %c0_i32_1 = arith.constant 0 : i32
    return %c0_i32, %c0_i32_0 : i32, i32
  }
  func.func @transform_2(%arg0: i32) -> (i32, i32) {
    %c0_i32 = arith.constant 0 : i32
    %c0_i32_0 = arith.constant 0 : i32
    %c0_i32_1 = arith.constant 0 : i32
    return %c0_i32, %c0_i32_0 : i32, i32
  }
  func.func @transform_3(%arg0: i32) -> (i32, i32) {
    %c0_i32 = arith.constant 0 : i32
    %c0_i32_0 = arith.constant 0 : i32
    %c0_i32_1 = arith.constant 0 : i32
    return %c0_i32, %c0_i32_0 : i32, i32
  }
  func.func @transform_4(%arg0: i32) -> (i32, i32) {
    %c0_i32 = arith.constant 0 : i32
    %c0_i32_0 = arith.constant 0 : i32
    %c0_i32_1 = arith.constant 0 : i32
    return %c0_i32, %c0_i32_0 : i32, i32
  }
  func.func @transform_5(%arg0: i32) -> (i32, i32) {
    %c0_i32 = arith.constant 0 : i32
    %c0_i32_0 = arith.constant 0 : i32
    %c0_i32_1 = arith.constant 0 : i32
    return %c0_i32, %c0_i32_0 : i32, i32
  }
  func.func @transform_6(%arg0: i32) -> (i32, i32) {
    %c0_i32 = arith.constant 0 : i32
    %c0_i32_0 = arith.constant 0 : i32
    %c0_i32_1 = arith.constant 0 : i32
    return %c0_i32, %c0_i32_0 : i32, i32
  }
  func.func @transform_7(%arg0: i32) -> (i32, i32) {
    %c0_i32 = arith.constant 0 : i32
    %c0_i32_0 = arith.constant 0 : i32
    return %arg0, %c0_i32 : i32, i32
  }
}

</mosaic_0001>

<llo_original>
// kernel: tpu_custom_call.1
$region0: #{tpu_custom_call.1}
  #allocation0 [shape = 'u32[]', space=smem, size = 0x4, offset = 0x4, fixed_abs, tag = 'smem constant byte address 0x4 - core index']
  #allocation1 [shape = 'u32[144,128]{1,0:T(1,128)}', space=vmem, size = 0x12000, scoped, tag = 'internal scratch']
  %s0 = inlined_call_operand.hbm [shape: bf16[32,256], index: 0, kind: input, shape index: {}]
  %s1 = inlined_call_operand.hbm [shape: bf16[256,512], index: 1, kind: input, shape index: {}]
  %s2 = inlined_call_operand.vmem [shape: bf16[1,512], index: 2, kind: input, shape index: {}]
  %s3 = inlined_call_operand.hbm [shape: bf16[512,512], index: 3, kind: input, shape index: {}]
  %s4 = inlined_call_operand.vmem [shape: bf16[1,512], index: 4, kind: input, shape index: {}]
  %s5 = inlined_call_operand.hbm [shape: bf16[512,128], index: 5, kind: input, shape index: {}]
  %s6 = inlined_call_operand.vmem [shape: f32[1,128], index: 6, kind: input, shape index: {}]
  %s7 = inlined_call_operand.hbm [shape: f32[32,128], index: 7, kind: output, shape index: {}]
  %s8 = sld [smem:[#allocation0]]
  $region77: #{tpu_custom_call.1} parent=0
    _
  %s10 = ssub.s32 1, %s8
  %s11 = scalar_select 0, %s10, %s8
  $region1: #{tpu_custom_call.1} parent=0
    #allocation2 [shape = 'u8[16384]{0}', space=vmem, size = 0x4000, scoped, tag = 'input window, operand 0']
    #allocation3 [shape = 's32[2]{0}', space=sflag, size = 0x8, scoped, tag = 'scoped memory for tpu_custom_call.1']
    #allocation4 [shape = 's32[2]{0}', space=sflag, size = 0x8, scoped, tag = 'scoped memory for tpu_custom_call.1']
    #allocation5 [shape = 'u8[262144]{0}', space=vmem, size = 0x40000, scoped, tag = 'input window, operand 1, single buffered']
    #allocation6 [shape = 's32[1]{0}', space=sflag, size = 0x4, scoped, tag = 'scoped memory for tpu_custom_call.1']
    #allocation7 [shape = 'u8[524288]{0}', space=vmem, size = 0x80000, scoped, tag = 'input window, operand 3, single buffered']
    #allocation8 [shape = 'u8[131072]{0}', space=vmem, size = 0x20000, scoped, tag = 'input window, operand 5, single buffered']
    #allocation9 [shape = 's32[1]{0}', space=sflag, size = 0x4, scoped, tag = 'scoped memory for tpu_custom_call.1']
    #allocation10 [shape = 'u8[16384]{0}', space=vmem, size = 0x4000, scoped, tag = 'output window, operand 0']
    %12 = vsyncpa [#allocation3], 0
    %s13 = scalar_lea.sflag [#allocation3], 1
    %14 = vsyncpa %s13, 0
    %15 = vsyncpa [#allocation6], 0
    %16 = vsyncpa [#allocation9], 0
    %17 = vsyncpa [#allocation4], 0
    %s18 = scalar_lea.sflag [#allocation4], 1
    %19 = vsyncpa %s18, 0
    loop: start=0, step=1, limit=4
    $region2: #{tpu_custom_call.1} parent=1 // loop_pre_header
      _
    $region3: #{tpu_custom_call.1} parent=1 // loop_header
      %s21 = sphi 0, %s25
      %p22 = scmp.ge.s32.totalorder %s21, 4
      %s31 = sphi 0, %s33
      %s34 = sphi 0, %s31
      %s35 = sphi 0, %s34
      %s51 = sphi 0, %s35
      %s55 = sphi 0, %s55
      %s57 = sphi 0, %s55
      %s58 = sphi 0, %s57
      %s72 = sphi 0, %s58
      %s76 = sphi 0, %s76
      %s78 = sphi 0, %s76
      %s79 = sphi 0, %s78
      %s93 = sphi 0, %s79
      %s97 = sphi 0, %s97
      %s99 = sphi 0, %s97
      %s100 = sphi 0, %s99
      %s114 = sphi 0, %s100
      %s118 = sphi 0, %s118
      %s120 = sphi 0, %s118
      %s121 = sphi 0, %s120
      %s135 = sphi 0, %s121
      %s139 = sphi 0, %s139
      %s141 = sphi 0, %s139
      %s142 = sphi 0, %s141
      %s156 = sphi 0, %s142
      %s160 = sphi 0, %s160
      %s162 = sphi 0, %s160
      %s163 = sphi 0, %s162
      %s177 = sphi 0, %s163
      %s183 = sphi 0, %s185
      %s186 = sphi 0, %s183
      %s187 = sphi 0, %s186
      %s203 = sphi 0, %s187
    $region4: #{tpu_custom_call.1} parent=1 // loop_header_branch
      %24 = sbr.rel (%p22) target = $region8
    $region5: #{tpu_custom_call.1} parent=1 // loop_body
      %s26 = ssub.s32 %s21, 1
      %s27 = ssub.s32 %s21, 2
      %s28 = sadd.s32 %s21, 1
      %s29 = ssub.s32 %s21, %s28
      %p30 = scmp.eq.s32.totalorder %s29, 0
      %s32 = sadd.s32 %s31, 1
      %s33 = scalar_select %p30, %s31, %s32
      %p36 = pneg %p30
      %p37 = scmp.eq.s32.totalorder %s21, 1
      %p38 = por %p36, %p37
      %p39 = scmp.ne.s32.totalorder %s31, %s34
      %p40 = scmp.eq.s32.totalorder %s21, 0
      %p41 = por %p39, %p40
      %p42 = scmp.ne.s32.totalorder %s31, %s34
      %p43 = scmp.eq.s32.totalorder %s26, 1
      %p44 = por %p42, %p43
      %p45 = scmp.ne.s32.totalorder %s34, %s35
      %p46 = scmp.eq.s32.totalorder %s26, 0
      %p47 = por %p45, %p46
      %p48 = scmp.ne.s32.totalorder %s34, %s35
      %p49 = scmp.eq.s32.totalorder %s27, 1
      %p50 = por %p48, %p49
      %p52 = scmp.ne.s32.totalorder %s35, %s51
      %p53 = scmp.eq.s32.totalorder %s27, 0
      %p54 = por %p52, %p53
      %s56 = sadd.s32 %s55, 1
      %p59 = scmp.eq.s32.totalorder %s21, 1
      %p60 = scmp.ne.s32.totalorder %s55, %s57
      %p61 = scmp.eq.s32.totalorder %s21, 0
      %p62 = por %p60, %p61
      %p63 = scmp.ne.s32.totalorder %s55, %s57
      %p64 = scmp.eq.s32.totalorder %s26, 1
      %p65 = por %p63, %p64
      %p66 = scmp.ne.s32.totalorder %s57, %s58
      %p67 = scmp.eq.s32.totalorder %s26, 0
      %p68 = por %p66, %p67
      %p69 = scmp.ne.s32.totalorder %s57, %s58
      %p70 = scmp.eq.s32.totalorder %s27, 1
      %p71 = por %p69, %p70
      %p73 = scmp.ne.s32.totalorder %s58, %s72
      %p74 = scmp.eq.s32.totalorder %s27, 0
      %p75 = por %p73, %p74
      %s77 = sadd.s32 %s76, 1
      %p80 = scmp.eq.s32.totalorder %s21, 1
      %p81 = scmp.ne.s32.totalorder %s76, %s78
      %p82 = scmp.eq.s32.totalorder %s21, 0
      %p83 = por %p81, %p82
      %p84 = scmp.ne.s32.totalorder %s76, %s78
      %p85 = scmp.eq.s32.totalorder %s26, 1
      %p86 = por %p84, %p85
      %p87 = scmp.ne.s32.totalorder %s78, %s79
      %p88 = scmp.eq.s32.totalorder %s26, 0
      %p89 = por %p87, %p88
      %p90 = scmp.ne.s32.totalorder %s78, %s79
      %p91 = scmp.eq.s32.totalorder %s27, 1
      %p92 = por %p90, %p91
      %p94 = scmp.ne.s32.totalorder %s79, %s93
      %p95 = scmp.eq.s32.totalorder %s27, 0
      %p96 = por %p94, %p95
      %s98 = sadd.s32 %s97, 1
      %p101 = scmp.eq.s32.totalorder %s21, 1
      %p102 = scmp.ne.s32.totalorder %s97, %s99
      %p103 = scmp.eq.s32.totalorder %s21, 0
      %p104 = por %p102, %p103
      %p105 = scmp.ne.s32.totalorder %s97, %s99
      %p106 = scmp.eq.s32.totalorder %s26, 1
      %p107 = por %p105, %p106
      %p108 = scmp.ne.s32.totalorder %s99, %s100
      %p109 = scmp.eq.s32.totalorder %s26, 0
      %p110 = por %p108, %p109
      %p111 = scmp.ne.s32.totalorder %s99, %s100
      %p112 = scmp.eq.s32.totalorder %s27, 1
      %p113 = por %p111, %p112
      %p115 = scmp.ne.s32.totalorder %s100, %s114
      %p116 = scmp.eq.s32.totalorder %s27, 0
      %p117 = por %p115, %p116
      %s119 = sadd.s32 %s118, 1
      %p122 = scmp.eq.s32.totalorder %s21, 1
      %p123 = scmp.ne.s32.totalorder %s118, %s120
      %p124 = scmp.eq.s32.totalorder %s21, 0
      %p125 = por %p123, %p124
      %p126 = scmp.ne.s32.totalorder %s118, %s120
      %p127 = scmp.eq.s32.totalorder %s26, 1
      %p128 = por %p126, %p127
      %p129 = scmp.ne.s32.totalorder %s120, %s121
      %p130 = scmp.eq.s32.totalorder %s26, 0
      %p131 = por %p129, %p130
      %p132 = scmp.ne.s32.totalorder %s120, %s121
      %p133 = scmp.eq.s32.totalorder %s27, 1
      %p134 = por %p132, %p133
      %p136 = scmp.ne.s32.totalorder %s121, %s135
      %p137 = scmp.eq.s32.totalorder %s27, 0
      %p138 = por %p136, %p137
      %s140 = sadd.s32 %s139, 1
      %p143 = scmp.eq.s32.totalorder %s21, 1
      %p144 = scmp.ne.s32.totalorder %s139, %s141
      %p145 = scmp.eq.s32.totalorder %s21, 0
      %p146 = por %p144, %p145
      %p147 = scmp.ne.s32.totalorder %s139, %s141
      %p148 = scmp.eq.s32.totalorder %s26, 1
      %p149 = por %p147, %p148
      %p150 = scmp.ne.s32.totalorder %s141, %s142
      %p151 = scmp.eq.s32.totalorder %s26, 0
      %p152 = por %p150, %p151
      %p153 = scmp.ne.s32.totalorder %s141, %s142
      %p154 = scmp.eq.s32.totalorder %s27, 1
      %p155 = por %p153, %p154
      %p157 = scmp.ne.s32.totalorder %s142, %s156
      %p158 = scmp.eq.s32.totalorder %s27, 0
      %p159 = por %p157, %p158
      %s161 = sadd.s32 %s160, 1
      %p164 = scmp.eq.s32.totalorder %s21, 1
      %p165 = scmp.ne.s32.totalorder %s160, %s162
      %p166 = scmp.eq.s32.totalorder %s21, 0
      %p167 = por %p165, %p166
      %p168 = scmp.ne.s32.totalorder %s160, %s162
      %p169 = scmp.eq.s32.totalorder %s26, 1
      %p170 = por %p168, %p169
      %p171 = scmp.ne.s32.totalorder %s162, %s163
      %p172 = scmp.eq.s32.totalorder %s26, 0
      %p173 = por %p171, %p172
      %p174 = scmp.ne.s32.totalorder %s162, %s163
      %p175 = scmp.eq.s32.totalorder %s27, 1
      %p176 = por %p174, %p175
      %p178 = scmp.ne.s32.totalorder %s163, %s177
      %p179 = scmp.eq.s32.totalorder %s27, 0
      %p180 = por %p178, %p179
      %s181 = ssub.s32 %s21, %s28
      %p182 = scmp.eq.s32.totalorder %s181, 0
      %s184 = sadd.s32 %s183, 1
      %s185 = scalar_select %p182, %s183, %s184
      %p188 = pneg %p182
      %p189 = scmp.eq.s32.totalorder %s21, 1
      %p190 = por %p188, %p189
      %p191 = scmp.ne.s32.totalorder %s183, %s186
      %p192 = scmp.eq.s32.totalorder %s21, 0
      %p193 = por %p191, %p192
      %p194 = scmp.ne.s32.totalorder %s183, %s186
      %p195 = scmp.eq.s32.totalorder %s26, 1
      %p196 = por %p194, %p195
      %p197 = scmp.ne.s32.totalorder %s186, %s187
      %p198 = scmp.eq.s32.totalorder %s26, 0
      %p199 = por %p197, %p198
      %p200 = scmp.ne.s32.totalorder %s186, %s187
      %p201 = scmp.eq.s32.totalorder %s27, 1
      %p202 = por %p200, %p201
      %p204 = scmp.ne.s32.totalorder %s187, %s203
      %p205 = scmp.eq.s32.totalorder %s27, 0
      %p206 = por %p204, %p205
      %p207 = scmp.le.s32.totalorder 1, %s21
      %p208 = scmp.lt.s32.totalorder %s21, 3
      %p209 = pnand %p207, %p208
      %p210 = pneg %p209
      // Predicated region
      $region9: #{tpu_custom_call.1} parent=5 // pred_check
        _
      $region10: #{tpu_custom_call.1} parent=5 // pred_check_branch
        %212 = sbr.rel (%p209) target = $region12
      $region11: #{tpu_custom_call.1} parent=5 // pred_region
        %s213 = ssub.s32 %s21, 1
        // Predicated region
        $region13: #{tpu_custom_call.1} parent=11 // pred_check
          %p214 = pneg %p68
        $region14: #{tpu_custom_call.1} parent=11 // pred_check_branch
          %216 = sbr.rel (%p214) target = $region16
        $region15: #{tpu_custom_call.1} parent=11 // pred_region
          %s218 = ssub.s32 8192, 8192
          %219 = vsyncadd [#allocation6], %s218
          %s220 = sshll.u32 [#allocation5], 4
          %s221 = int_to_ptr.vmem [resolvable:$true] %s220
          %226 = dma.hbm_to_vmem [thread:$0]  %s1, 8192, %s221, [#allocation6], 256, 256, 16
        $region16: #{tpu_custom_call.1} parent=11 // pred_fallthru
          _
        // Predicated region
        $region17: #{tpu_custom_call.1} parent=11 // pred_check
          %p227 = pneg %p89
        $region18: #{tpu_custom_call.1} parent=11 // pred_check_branch
          %229 = sbr.rel (%p227) target = $region20
        $region19: #{tpu_custom_call.1} parent=11 // pred_region
          _
        $region20: #{tpu_custom_call.1} parent=11 // pred_fallthru
          _
        // Predicated region
        $region21: #{tpu_custom_call.1} parent=11 // pred_check
          %p230 = pneg %p110
        $region22: #{tpu_custom_call.1} parent=11 // pred_check_branch
          %232 = sbr.rel (%p230) target = $region24
        $region23: #{tpu_custom_call.1} parent=11 // pred_region
          %s234 = ssub.s32 16384, 16384
          %235 = vsyncadd [#allocation6], %s234
          %s236 = sshll.u32 [#allocation7], 4
          %s237 = int_to_ptr.vmem [resolvable:$true] %s236
          %242 = dma.hbm_to_vmem [thread:$0]  %s3, 16384, %s237, [#allocation6], 256, 256, 16
        $region24: #{tpu_custom_call.1} parent=11 // pred_fallthru
          _
        // Predicated region
        $region25: #{tpu_custom_call.1} parent=11 // pred_check
          %p243 = pneg %p131
        $region26: #{tpu_custom_call.1} parent=11 // pred_check_branch
          %245 = sbr.rel (%p243) target = $region28
        $region27: #{tpu_custom_call.1} parent=11 // pred_region
          _
        $region28: #{tpu_custom_call.1} parent=11 // pred_fallthru
          _
        // Predicated region
        $region29: #{tpu_custom_call.1} parent=11 // pred_check
          %p246 = pneg %p152
        $region30: #{tpu_custom_call.1} parent=11 // pred_check_branch
          %248 = sbr.rel (%p246) target = $region32
        $region31: #{tpu_custom_call.1} parent=11 // pred_region
          %s250 = ssub.s32 4096, 4096
          %251 = vsyncadd [#allocation9], %s250
          %s252 = sshll.u32 [#allocation8], 4
          %s253 = int_to_ptr.vmem [resolvable:$true] %s252
          %258 = dma.hbm_to_vmem [thread:$0]  %s5, 4096, %s253, [#allocation9], 64, 64, 4
        $region32: #{tpu_custom_call.1} parent=11 // pred_fallthru
          _
        // Predicated region
        $region33: #{tpu_custom_call.1} parent=11 // pred_check
          %p259 = pneg %p173
        $region34: #{tpu_custom_call.1} parent=11 // pred_check_branch
          %261 = sbr.rel (%p259) target = $region36
        $region35: #{tpu_custom_call.1} parent=11 // pred_region
          _
        $region36: #{tpu_custom_call.1} parent=11 // pred_fallthru
          _
      $region12: #{tpu_custom_call.1} parent=5 // pred_fallthru
        _
      %p262 = scmp.lt.s32.totalorder %s21, 2
      // Predicated region
      $region37: #{tpu_custom_call.1} parent=5 // pred_check
        %p263 = pneg %p262
      $region38: #{tpu_custom_call.1} parent=5 // pred_check_branch
        %265 = sbr.rel (%p263) target = $region40
      $region39: #{tpu_custom_call.1} parent=5 // pred_region
        // Predicated region
        $region41: #{tpu_custom_call.1} parent=39 // pred_check
          %p266 = pneg %p41
        $region42: #{tpu_custom_call.1} parent=39 // pred_check_branch
          %268 = sbr.rel (%p266) target = $region44
        $region43: #{tpu_custom_call.1} parent=39 // pred_region
          %s269 = sand.u32 %s31, 1
          %s270 = scalar_lea.sflag [#allocation3], %s269
          %s271 = sand.u32 %s31, 1
          %s272 = smul.addr %s271, 16
          %s273 = scalar_lea.vmem [#allocation2], %s272
          %s274 = smul.u32 2, %s21
          %s276 = ssub.s32 256, 256
          %277 = vsyncadd %s270, %s276
          %s278 = smul.addr %s274, 2
          %s279 = smul.addr %s278, 64
          %s280 = scalar_lea.hbm %s0, %s279
          %s281 = sshll.u32 %s273, 4
          %s282 = int_to_ptr.vmem [resolvable:$true] %s281
          %287 = dma.hbm_to_vmem [thread:$0]  %s280, 256, %s282, %s270, 128, 128, 8
        $region44: #{tpu_custom_call.1} parent=39 // pred_fallthru
          _
      $region40: #{tpu_custom_call.1} parent=5 // pred_fallthru
        _
      %p288 = scmp.le.s32.totalorder 1, %s21
      %p289 = scmp.lt.s32.totalorder %s21, 3
      %p290 = pnand %p288, %p289
      %p291 = pneg %p290
      // Predicated region
      $region45: #{tpu_custom_call.1} parent=5 // pred_check
        _
      $region46: #{tpu_custom_call.1} parent=5 // pred_check_branch
        %293 = sbr.rel (%p290) target = $region48
      $region47: #{tpu_custom_call.1} parent=5 // pred_region
        %s294 = ssub.s32 %s21, 1
        %s295 = sand.u32 %s34, 1
        %s296 = scalar_lea.sflag [#allocation3], %s295
        %s297 = sand.u32 %s34, 1
        %s298 = smul.addr %s297, 16
        %s299 = scalar_lea.vmem [#allocation2], %s298
        // Predicated region
        $region49: #{tpu_custom_call.1} parent=47 // pred_check
          %p300 = pneg %p47
        $region50: #{tpu_custom_call.1} parent=47 // pred_check_branch
          %302 = sbr.rel (%p300) target = $region52
        $region51: #{tpu_custom_call.1} parent=47 // pred_region
          %303 = dma.done %s296, 256
        $region52: #{tpu_custom_call.1} parent=47 // pred_fallthru
          _
        // Predicated region
        $region53: #{tpu_custom_call.1} parent=47 // pred_check
          %p304 = pneg %p68
        $region54: #{tpu_custom_call.1} parent=47 // pred_check_branch
          %306 = sbr.rel (%p304) target = $region56
        $region55: #{tpu_custom_call.1} parent=47 // pred_region
          %307 = dma.done [#allocation6], 8192
        $region56: #{tpu_custom_call.1} parent=47 // pred_fallthru
          _
        // Predicated region
        $region57: #{tpu_custom_call.1} parent=47 // pred_check
          %p308 = pneg %p110
        $region58: #{tpu_custom_call.1} parent=47 // pred_check_branch
          %310 = sbr.rel (%p308) target = $region60
        $region59: #{tpu_custom_call.1} parent=47 // pred_region
          %311 = dma.done [#allocation6], 16384
        $region60: #{tpu_custom_call.1} parent=47 // pred_fallthru
          _
        // Predicated region
        $region61: #{tpu_custom_call.1} parent=47 // pred_check
          %p312 = pneg %p152
        $region62: #{tpu_custom_call.1} parent=47 // pred_check_branch
          %314 = sbr.rel (%p312) target = $region64
        $region63: #{tpu_custom_call.1} parent=47 // pred_region
          %315 = dma.done [#allocation9], 4096
        $region64: #{tpu_custom_call.1} parent=47 // pred_fallthru
          _
        %s316 = sand.u32 %s34, 1
        %s317 = scalar_lea.sflag [#allocation3], %s316
        %s318 = sand.u32 %s34, 1
        %s319 = smul.addr %s318, 16
        %s320 = scalar_lea.vmem [#allocation2], %s319
        %p321 = pneg %p47
        %p322 = pneg %p44
        %p323 = pneg %p68
        %p324 = pneg %p65
        %p325 = pneg %p89
        %p326 = pneg %p86
        %p327 = pneg %p110
        %p328 = pneg %p107
        %p329 = pneg %p131
        %p330 = pneg %p128
        %p331 = pneg %p152
        %p332 = pneg %p149
        %p333 = pneg %p173
        %p334 = pneg %p170
        %p335 = pneg %p199
        %p336 = pneg %p196
        %s337 = sand.u32 %s186, 1
        %s338 = scalar_lea.sflag [#allocation4], %s337
        %s339 = sand.u32 %s186, 1
        %s340 = smul.addr %s339, 16
        %s341 = scalar_lea.vmem [#allocation10], %s340
        %s342 = smul.u32 2, %s26
        %s343 = smul.u32 2, %s26
        %v345 = vld [vmem:[%s299] sm:$0xff]
        %v346 = vld [vmem:[%s299 + $0x8] sm:$0xff]
        %v347 = vld [vmem:[#allocation5] sm:$0xff]
        %v348 = vld [vmem:[#allocation5 + $0x8] sm:$0xff]
        %v349 = vld [vmem:[#allocation5 + $0x10] sm:$0xff]
        %v350 = vld [vmem:[#allocation5 + $0x18] sm:$0xff]
        %v351 = vld [vmem:[#allocation5 + $0x20] sm:$0xff]
        %v352 = vld [vmem:[#allocation5 + $0x28] sm:$0xff]
        %v353 = vld [vmem:[#allocation5 + $0x30] sm:$0xff]
        %v354 = vld [vmem:[#allocation5 + $0x38] sm:$0xff]
        %v355 = vld [vmem:[#allocation5 + $0x40] sm:$0xff]
        %v356 = vld [vmem:[#allocation5 + $0x48] sm:$0xff]
        %v357 = vld [vmem:[#allocation5 + $0x50] sm:$0xff]
        %v358 = vld [vmem:[#allocation5 + $0x58] sm:$0xff]
        %v359 = vld [vmem:[#allocation5 + $0x60] sm:$0xff]
        %v360 = vld [vmem:[#allocation5 + $0x68] sm:$0xff]
        %v361 = vld [vmem:[#allocation5 + $0x70] sm:$0xff]
        %v362 = vld [vmem:[#allocation5 + $0x78] sm:$0xff]
        %v363 = vld [vmem:[#allocation5 + $0x80] sm:$0xff]
        %v364 = vld [vmem:[#allocation5 + $0x88] sm:$0xff]
        %v365 = vld [vmem:[#allocation5 + $0x90] sm:$0xff]
        %v366 = vld [vmem:[#allocation5 + $0x98] sm:$0xff]
        %v367 = vld [vmem:[#allocation5 + $0xa0] sm:$0xff]
        %v368 = vld [vmem:[#allocation5 + $0xa8] sm:$0xff]
        %v369 = vld [vmem:[#allocation5 + $0xb0] sm:$0xff]
        %v370 = vld [vmem:[#allocation5 + $0xb8] sm:$0xff]
        %v371 = vld [vmem:[#allocation5 + $0xc0] sm:$0xff]
        %v372 = vld [vmem:[#allocation5 + $0xc8] sm:$0xff]
        %v373 = vld [vmem:[#allocation5 + $0xd0] sm:$0xff]
        %v374 = vld [vmem:[#allocation5 + $0xd8] sm:$0xff]
        %v375 = vld [vmem:[#allocation5 + $0xe0] sm:$0xff]
        %v376 = vld [vmem:[#allocation5 + $0xe8] sm:$0xff]
        %v377 = vld [vmem:[#allocation5 + $0xf0] sm:$0xff]
        %v378 = vld [vmem:[#allocation5 + $0xf8] sm:$0xff]
        %v379 = vld [vmem:[#allocation5 + $0x100] sm:$0xff]
        %v380 = vld [vmem:[#allocation5 + $0x108] sm:$0xff]
        %v381 = vld [vmem:[#allocation5 + $0x110] sm:$0xff]
        %v382 = vld [vmem:[#allocation5 + $0x118] sm:$0xff]
        %v383 = vld [vmem:[#allocation5 + $0x120] sm:$0xff]
        %v384 = vld [vmem:[#allocation5 + $0x128] sm:$0xff]
        %v385 = vld [vmem:[#allocation5 + $0x130] sm:$0xff]
        %v386 = vld [vmem:[#allocation5 + $0x138] sm:$0xff]
        %v387 = vld [vmem:[#allocation5 + $0x140] sm:$0xff]
        %v388 = vld [vmem:[#allocation5 + $0x148] sm:$0xff]
        %v389 = vld [vmem:[#allocation5 + $0x150] sm:$0xff]
        %v390 = vld [vmem:[#allocation5 + $0x158] sm:$0xff]
        %v391 = vld [vmem:[#allocation5 + $0x160] sm:$0xff]
        %v392 = vld [vmem:[#allocation5 + $0x168] sm:$0xff]
        %v393 = vld [vmem:[#allocation5 + $0x170] sm:$0xff]
        %v394 = vld [vmem:[#allocation5 + $0x178] sm:$0xff]
        %v395 = vld [vmem:[#allocation5 + $0x180] sm:$0xff]
        %v396 = vld [vmem:[#allocation5 + $0x188] sm:$0xff]
        %v397 = vld [vmem:[#allocation5 + $0x190] sm:$0xff]
        %v398 = vld [vmem:[#allocation5 + $0x198] sm:$0xff]
        %v399 = vld [vmem:[#allocation5 + $0x1a0] sm:$0xff]
        %v400 = vld [vmem:[#allocation5 + $0x1a8] sm:$0xff]
        %v401 = vld [vmem:[#allocation5 + $0x1b0] sm:$0xff]
        %v402 = vld [vmem:[#allocation5 + $0x1b8] sm:$0xff]
        %v403 = vld [vmem:[#allocation5 + $0x1c0] sm:$0xff]
        %v404 = vld [vmem:[#allocation5 + $0x1c8] sm:$0xff]
        %v405 = vld [vmem:[#allocation5 + $0x1d0] sm:$0xff]
        %v406 = vld [vmem:[#allocation5 + $0x1d8] sm:$0xff]
        %v407 = vld [vmem:[#allocation5 + $0x1e0] sm:$0xff]
        %v408 = vld [vmem:[#allocation5 + $0x1e8] sm:$0xff]
        %v409 = vld [vmem:[#allocation5 + $0x1f0] sm:$0xff]
        %v410 = vld [vmem:[#allocation5 + $0x1f8] sm:$0xff]
        %v413 = vunpack.c.l.b16 %v345
        %v414 = vunpack.c.h.b16 %v345
        %v415 = vunpack.c.l.b16 %v346
        %v416 = vunpack.c.h.b16 %v346
        %v417 = vpack.c.b16 %v415, %v413
        %v418 = vpack.c.b16 %v416, %v414
        %v485 = vunpack.c.l.b16 %v347
        %v486 = vunpack.c.h.b16 %v347
        %v487 = vunpack.c.l.b16 %v348
        %v488 = vunpack.c.h.b16 %v348
        %v489 = vunpack.c.l.b16 %v349
        %v490 = vunpack.c.h.b16 %v349
        %v491 = vunpack.c.l.b16 %v350
        %v492 = vunpack.c.h.b16 %v350
        %v493 = vunpack.c.l.b16 %v351
        %v494 = vunpack.c.h.b16 %v351
        %v495 = vunpack.c.l.b16 %v352
        %v496 = vunpack.c.h.b16 %v352
        %v497 = vunpack.c.l.b16 %v353
        %v498 = vunpack.c.h.b16 %v353
        %v499 = vunpack.c.l.b16 %v354
        %v500 = vunpack.c.h.b16 %v354
        %v501 = vunpack.c.l.b16 %v355
        %v502 = vunpack.c.h.b16 %v355
        %v503 = vunpack.c.l.b16 %v356
        %v504 = vunpack.c.h.b16 %v356
        %v505 = vunpack.c.l.b16 %v357
        %v506 = vunpack.c.h.b16 %v357
        %v507 = vunpack.c.l.b16 %v358
        %v508 = vunpack.c.h.b16 %v358
        %v509 = vunpack.c.l.b16 %v359
        %v510 = vunpack.c.h.b16 %v359
        %v511 = vunpack.c.l.b16 %v360
        %v512 = vunpack.c.h.b16 %v360
        %v513 = vunpack.c.l.b16 %v361
        %v514 = vunpack.c.h.b16 %v361
        %v515 = vunpack.c.l.b16 %v362
        %v516 = vunpack.c.h.b16 %v362
        %v517 = vunpack.c.l.b16 %v363
        %v518 = vunpack.c.h.b16 %v363
        %v519 = vunpack.c.l.b16 %v364
        %v520 = vunpack.c.h.b16 %v364
        %v521 = vunpack.c.l.b16 %v365
        %v522 = vunpack.c.h.b16 %v365
        %v523 = vunpack.c.l.b16 %v366
        %v524 = vunpack.c.h.b16 %v366
        %v525 = vunpack.c.l.b16 %v367
        %v526 = vunpack.c.h.b16 %v367
        %v527 = vunpack.c.l.b16 %v368
        %v528 = vunpack.c.h.b16 %v368
        %v529 = vunpack.c.l.b16 %v369
        %v530 = vunpack.c.h.b16 %v369
        %v531 = vunpack.c.l.b16 %v370
        %v532 = vunpack.c.h.b16 %v370
        %v533 = vunpack.c.l.b16 %v371
        %v534 = vunpack.c.h.b16 %v371
        %v535 = vunpack.c.l.b16 %v372
        %v536 = vunpack.c.h.b16 %v372
        %v537 = vunpack.c.l.b16 %v373
        %v538 = vunpack.c.h.b16 %v373
        %v539 = vunpack.c.l.b16 %v374
        %v540 = vunpack.c.h.b16 %v374
        %v541 = vunpack.c.l.b16 %v375
        %v542 = vunpack.c.h.b16 %v375
        %v543 = vunpack.c.l.b16 %v376
        %v544 = vunpack.c.h.b16 %v376
        %v545 = vunpack.c.l.b16 %v377
        %v546 = vunpack.c.h.b16 %v377
        %v547 = vunpack.c.l.b16 %v378
        %v548 = vunpack.c.h.b16 %v378
        %v549 = vunpack.c.l.b16 %v379
        %v550 = vunpack.c.h.b16 %v379
        %v551 = vunpack.c.l.b16 %v380
        %v552 = vunpack.c.h.b16 %v380
        %v553 = vunpack.c.l.b16 %v381
        %v554 = vunpack.c.h.b16 %v381
        %v555 = vunpack.c.l.b16 %v382
        %v556 = vunpack.c.h.b16 %v382
        %v557 = vunpack.c.l.b16 %v383
        %v558 = vunpack.c.h.b16 %v383
        %v559 = vunpack.c.l.b16 %v384
        %v560 = vunpack.c.h.b16 %v384
        %v561 = vunpack.c.l.b16 %v385
        %v562 = vunpack.c.h.b16 %v385
        %v563 = vunpack.c.l.b16 %v386
        %v564 = vunpack.c.h.b16 %v386
        %v565 = vunpack.c.l.b16 %v387
        %v566 = vunpack.c.h.b16 %v387
        %v567 = vunpack.c.l.b16 %v388
        %v568 = vunpack.c.h.b16 %v388
        %v569 = vunpack.c.l.b16 %v389
        %v570 = vunpack.c.h.b16 %v389
        %v571 = vunpack.c.l.b16 %v390
        %v572 = vunpack.c.h.b16 %v390
        %v573 = vunpack.c.l.b16 %v391
        %v574 = vunpack.c.h.b16 %v391
        %v575 = vunpack.c.l.b16 %v392
        %v576 = vunpack.c.h.b16 %v392
        %v577 = vunpack.c.l.b16 %v393
        %v578 = vunpack.c.h.b16 %v393
        %v579 = vunpack.c.l.b16 %v394
        %v580 = vunpack.c.h.b16 %v394
        %v581 = vunpack.c.l.b16 %v395
        %v582 = vunpack.c.h.b16 %v395
        %v583 = vunpack.c.l.b16 %v396
        %v584 = vunpack.c.h.b16 %v396
        %v585 = vunpack.c.l.b16 %v397
        %v586 = vunpack.c.h.b16 %v397
        %v587 = vunpack.c.l.b16 %v398
        %v588 = vunpack.c.h.b16 %v398
        %v589 = vunpack.c.l.b16 %v399
        %v590 = vunpack.c.h.b16 %v399
        %v591 = vunpack.c.l.b16 %v400
        %v592 = vunpack.c.h.b16 %v400
        %v593 = vunpack.c.l.b16 %v401
        %v594 = vunpack.c.h.b16 %v401
        %v595 = vunpack.c.l.b16 %v402
        %v596 = vunpack.c.h.b16 %v402
        %v597 = vunpack.c.l.b16 %v403
        %v598 = vunpack.c.h.b16 %v403
        %v599 = vunpack.c.l.b16 %v404
        %v600 = vunpack.c.h.b16 %v404
        %v601 = vunpack.c.l.b16 %v405
        %v602 = vunpack.c.h.b16 %v405
        %v603 = vunpack.c.l.b16 %v406
        %v604 = vunpack.c.h.b16 %v406
        %v605 = vunpack.c.l.b16 %v407
        %v606 = vunpack.c.h.b16 %v407
        %v607 = vunpack.c.l.b16 %v408
        %v608 = vunpack.c.h.b16 %v408
        %v609 = vunpack.c.l.b16 %v409
        %v610 = vunpack.c.h.b16 %v409
        %v611 = vunpack.c.l.b16 %v410
        %v612 = vunpack.c.h.b16 %v410
        %v613 = vpack.c.b16 %v489, %v485
        %v614 = vpack.c.b16 %v490, %v486
        %v615 = vpack.c.b16 %v491, %v487
        %v616 = vpack.c.b16 %v492, %v488
        %v617 = vpack.c.b16 %v497, %v493
        %v618 = vpack.c.b16 %v498, %v494
        %v619 = vpack.c.b16 %v499, %v495
        %v620 = vpack.c.b16 %v500, %v496
        %v621 = vpack.c.b16 %v505, %v501
        %v622 = vpack.c.b16 %v506, %v502
        %v623 = vpack.c.b16 %v507, %v503
        %v624 = vpack.c.b16 %v508, %v504
        %v625 = vpack.c.b16 %v513, %v509
        %v626 = vpack.c.b16 %v514, %v510
        %v627 = vpack.c.b16 %v515, %v511
        %v628 = vpack.c.b16 %v516, %v512
        %v629 = vpack.c.b16 %v521, %v517
        %v630 = vpack.c.b16 %v522, %v518
        %v631 = vpack.c.b16 %v523, %v519
        %v632 = vpack.c.b16 %v524, %v520
        %v633 = vpack.c.b16 %v529, %v525
        %v634 = vpack.c.b16 %v530, %v526
        %v635 = vpack.c.b16 %v531, %v527
        %v636 = vpack.c.b16 %v532, %v528
        %v637 = vpack.c.b16 %v537, %v533
        %v638 = vpack.c.b16 %v538, %v534
        %v639 = vpack.c.b16 %v539, %v535
        %v640 = vpack.c.b16 %v540, %v536
        %v641 = vpack.c.b16 %v545, %v541
        %v642 = vpack.c.b16 %v546, %v542
        %v643 = vpack.c.b16 %v547, %v543
        %v644 = vpack.c.b16 %v548, %v544
        %v645 = vpack.c.b16 %v553, %v549
        %v646 = vpack.c.b16 %v554, %v550
        %v647 = vpack.c.b16 %v555, %v551
        %v648 = vpack.c.b16 %v556, %v552
        %v649 = vpack.c.b16 %v561, %v557
        %v650 = vpack.c.b16 %v562, %v558
        %v651 = vpack.c.b16 %v563, %v559
        %v652 = vpack.c.b16 %v564, %v560
        %v653 = vpack.c.b16 %v569, %v565
        %v654 = vpack.c.b16 %v570, %v566
        %v655 = vpack.c.b16 %v571, %v567
        %v656 = vpack.c.b16 %v572, %v568
        %v657 = vpack.c.b16 %v577, %v573
        %v658 = vpack.c.b16 %v578, %v574
        %v659 = vpack.c.b16 %v579, %v575
        %v660 = vpack.c.b16 %v580, %v576
        %v661 = vpack.c.b16 %v585, %v581
        %v662 = vpack.c.b16 %v586, %v582
        %v663 = vpack.c.b16 %v587, %v583
        %v664 = vpack.c.b16 %v588, %v584
        %v665 = vpack.c.b16 %v593, %v589
        %v666 = vpack.c.b16 %v594, %v590
        %v667 = vpack.c.b16 %v595, %v591
        %v668 = vpack.c.b16 %v596, %v592
        %v669 = vpack.c.b16 %v601, %v597
        %v670 = vpack.c.b16 %v602, %v598
        %v671 = vpack.c.b16 %v603, %v599
        %v672 = vpack.c.b16 %v604, %v600
        %v673 = vpack.c.b16 %v609, %v605
        %v674 = vpack.c.b16 %v610, %v606
        %v675 = vpack.c.b16 %v611, %v607
        %v676 = vpack.c.b16 %v612, %v608
        %741 = vmatprep.subr.bf16.mxu0 %v614
        %742 = vmatpush1.bf16.msra.mxu0 %v613
        %743 = vmatprep.subr.bf16.mxu0 %v618
        %744 = vmatpush1.bf16.msra.mxu0 %v617
        %745 = vmatprep.subr.bf16.mxu0 %v622
        %746 = vmatpush1.bf16.msra.mxu0 %v621
        %747 = vmatprep.subr.bf16.mxu0 %v626
        %748 = vmatpush1.bf16.msra.mxu0 %v625
        %749 = vmatprep.subr.bf16.mxu0 %v630
        %750 = vmatpush1.bf16.msra.mxu0 %v629
        %751 = vmatprep.subr.bf16.mxu0 %v634
        %752 = vmatpush1.bf16.msra.mxu0 %v633
        %753 = vmatprep.subr.bf16.mxu0 %v638
        %754 = vmatpush1.bf16.msra.mxu0 %v637
        %755 = vmatprep.subr.bf16.mxu0 %v642
        %756 = vmatpush1.bf16.msra.mxu0 %v641
        %757 = vmatprep.subr.bf16.mxu0 %v646
        %758 = vmatpush1.bf16.msra.mxu0 %v645
        %759 = vmatprep.subr.bf16.mxu0 %v650
        %760 = vmatpush1.bf16.msra.mxu0 %v649
        %761 = vmatprep.subr.bf16.mxu0 %v654
        %762 = vmatpush1.bf16.msra.mxu0 %v653
        %763 = vmatprep.subr.bf16.mxu0 %v658
        %764 = vmatpush1.bf16.msra.mxu0 %v657
        %765 = vmatprep.subr.bf16.mxu0 %v662
        %766 = vmatpush1.bf16.msra.mxu0 %v661
        %767 = vmatprep.subr.bf16.mxu0 %v666
        %768 = vmatpush1.bf16.msra.mxu0 %v665
        %769 = vmatprep.subr.bf16.mxu0 %v670
        %770 = vmatpush1.bf16.msra.mxu0 %v669
        %771 = vmatprep.subr.bf16.mxu0 %v674
        %772 = vmatpush1.bf16.msra.mxu0 %v673
        %773 = vmatprep.mubr.bf16.mxu0 %v418
        %774 = vmatmul.mubr.bf16.gmra.mrb[0].mxu0 %v417
        %v775 = vpop.f32.mrb[0].mxu0
        %v776 = vadd.f32 0.0, %v775
        %v777 = vpop.f32.mrb[0].mxu0
        %v778 = vadd.f32 0.0, %v777
        %v779 = vpop.f32.mrb[0].mxu0
        %v780 = vadd.f32 0.0, %v779
        %v781 = vpop.f32.mrb[0].mxu0
        %v782 = vadd.f32 0.0, %v781
        %783 = vdwg.mxu0
        %784 = vmatprep.subr.bf16.mxu0 %v616
        %785 = vmatpush1.bf16.msra.mxu0 %v615
        %786 = vmatprep.subr.bf16.mxu0 %v620
        %787 = vmatpush1.bf16.msra.mxu0 %v619
        %788 = vmatprep.subr.bf16.mxu0 %v624
        %789 = vmatpush1.bf16.msra.mxu0 %v623
        %790 = vmatprep.subr.bf16.mxu0 %v628
        %791 = vmatpush1.bf16.msra.mxu0 %v627
        %792 = vmatprep.subr.bf16.mxu0 %v632
        %793 = vmatpush1.bf16.msra.mxu0 %v631
        %794 = vmatprep.subr.bf16.mxu0 %v636
        %795 = vmatpush1.bf16.msra.mxu0 %v635
        %796 = vmatprep.subr.bf16.mxu0 %v640
        %797 = vmatpush1.bf16.msra.mxu0 %v639
        %798 = vmatprep.subr.bf16.mxu0 %v644
        %799 = vmatpush1.bf16.msra.mxu0 %v643
        %800 = vmatprep.subr.bf16.mxu0 %v648
        %801 = vmatpush1.bf16.msra.mxu0 %v647
        %802 = vmatprep.subr.bf16.mxu0 %v652
        %803 = vmatpush1.bf16.msra.mxu0 %v651
        %804 = vmatprep.subr.bf16.mxu0 %v656
        %805 = vmatpush1.bf16.msra.mxu0 %v655
        %806 = vmatprep.subr.bf16.mxu0 %v660
        %807 = vmatpush1.bf16.msra.mxu0 %v659
        %808 = vmatprep.subr.bf16.mxu0 %v664
        %809 = vmatpush1.bf16.msra.mxu0 %v663
        %810 = vmatprep.subr.bf16.mxu0 %v668
        %811 = vmatpush1.bf16.msra.mxu0 %v667
        %812 = vmatprep.subr.bf16.mxu0 %v672
        %813 = vmatpush1.bf16.msra.mxu0 %v671
        %814 = vmatprep.subr.bf16.mxu0 %v676
        %815 = vmatpush1.bf16.msra.mxu0 %v675
        %816 = vmatprep.mubr.bf16.mxu0 %v418
        %817 = vmatmul.mubr.bf16.gmra.mrb[0].mxu0 %v417
        %v818 = vpop.f32.mrb[0].mxu0
        %v819 = vadd.f32 0.0, %v818
        %v820 = vpop.f32.mrb[0].mxu0
        %v821 = vadd.f32 0.0, %v820
        %v822 = vpop.f32.mrb[0].mxu0
        %v823 = vadd.f32 0.0, %v822
        %v824 = vpop.f32.mrb[0].mxu0
        %v825 = vadd.f32 0.0, %v824
        %826 = vdwg.mxu0
        %v827 = vpack.c.bf16 %v780, %v776
        %v828 = vpack.c.bf16 %v782, %v778
        %v829 = vpack.c.bf16 %v823, %v819
        %v830 = vpack.c.bf16 %v825, %v821
        %v831 = vld [vmem:[%s2] sm:$0xf]
        %v834 = vunpack.c.l.s4 1966171168
        %v835 = vunpack.c.0.s8 %v834
        %v836 = vlaneseq
        %v837 = vshrl.u32 %v836, 7
        %v838 = vsub.s32 %v835, %v837
        %v839 = vrot.slane %v831, %v838
        %v840 = vcombine.high %v839, %v839
        %v842 = vunpack.c.l.s4 1966171168
        %v843 = vunpack.c.0.s8 %v842
        %v844 = vlaneseq
        %v845 = vshrl.u32 %v844, 7
        %v846 = vsub.s32 %v843, %v845
        %v847 = vrot.slane %v839, %v846
        %v849 = vunpack.c.l.s4 1966171168
        %v850 = vunpack.c.0.s8 %v849
        %v851 = vlaneseq
        %v852 = vshrl.u32 %v851, 7
        %v853 = vsub.s32 %v850, %v852
        %v854 = vrot.slane %v840, %v853
        %v855 = vcombine.high %v847, %v847
        %v856 = vcombine.high %v854, %v854
        %v858 = vpack.i.b16 %v847, %v847
        %v860 = vlaneseq
        %v861 = vshrl.u32 %v860, 7
        %v862 = vsub.s32 0, %v861
        %v863 = vrot.slane %v858, %v862
        %v865 = vpack.i.b16 %v854, %v854
        %v867 = vlaneseq
        %v868 = vshrl.u32 %v867, 7
        %v869 = vsub.s32 0, %v868
        %v870 = vrot.slane %v865, %v869
        %v872 = vpack.i.b16 %v855, %v855
        %v874 = vlaneseq
        %v875 = vshrl.u32 %v874, 7
        %v876 = vsub.s32 0, %v875
        %v877 = vrot.slane %v872, %v876
        %v879 = vpack.i.b16 %v856, %v856
        %v881 = vlaneseq
        %v882 = vshrl.u32 %v881, 7
        %v883 = vsub.s32 0, %v882
        %v884 = vrot.slane %v879, %v883
        %v885 = vadd.bf16 %v827, %v863
        %v886 = vadd.bf16 %v828, %v870
        %v887 = vadd.bf16 %v829, %v877
        %v888 = vadd.bf16 %v830, %v884
        %v889 = vmax.bf16 %v885, 0
        %v890 = vmax.bf16 %v886, 0
        %v891 = vmax.bf16 %v887, 0
        %v892 = vmax.bf16 %v888, 0
        %v893 = vld [vmem:[#allocation7] sm:$0xff]
        %v894 = vld [vmem:[#allocation7 + $0x8] sm:$0xff]
        %v895 = vld [vmem:[#allocation7 + $0x10] sm:$0xff]
        %v896 = vld [vmem:[#allocation7 + $0x18] sm:$0xff]
        %v897 = vld [vmem:[#allocation7 + $0x20] sm:$0xff]
        %v898 = vld [vmem:[#allocation7 + $0x28] sm:$0xff]
        %v899 = vld [vmem:[#allocation7 + $0x30] sm:$0xff]
        %v900 = vld [vmem:[#allocation7 + $0x38] sm:$0xff]
        %v901 = vld [vmem:[#allocation7 + $0x40] sm:$0xff]
        %v902 = vld [vmem:[#allocation7 + $0x48] sm:$0xff]
        %v903 = vld [vmem:[#allocation7 + $0x50] sm:$0xff]
        %v904 = vld [vmem:[#allocation7 + $0x58] sm:$0xff]
        %v905 = vld [vmem:[#allocation7 + $0x60] sm:$0xff]
        %v906 = vld [vmem:[#allocation7 + $0x68] sm:$0xff]
        %v907 = vld [vmem:[#allocation7 + $0x70] sm:$0xff]
        %v908 = vld [vmem:[#allocation7 + $0x78] sm:$0xff]
        %v909 = vld [vmem:[#allocation7 + $0x80] sm:$0xff]
        %v910 = vld [vmem:[#allocation7 + $0x88] sm:$0xff]
        %v911 = vld [vmem:[#allocation7 + $0x90] sm:$0xff]
        %v912 = vld [vmem:[#allocation7 + $0x98] sm:$0xff]
        %v913 = vld [vmem:[#allocation7 + $0xa0] sm:$0xff]
        %v914 = vld [vmem:[#allocation7 + $0xa8] sm:$0xff]
        %v915 = vld [vmem:[#allocation7 + $0xb0] sm:$0xff]
        %v916 = vld [vmem:[#allocation7 + $0xb8] sm:$0xff]
        %v917 = vld [vmem:[#allocation7 + $0xc0] sm:$0xff]
        %v918 = vld [vmem:[#allocation7 + $0xc8] sm:$0xff]
        %v919 = vld [vmem:[#allocation7 + $0xd0] sm:$0xff]
        %v920 = vld [vmem:[#allocation7 + $0xd8] sm:$0xff]
        %v921 = vld [vmem:[#allocation7 + $0xe0] sm:$0xff]
        %v922 = vld [vmem:[#allocation7 + $0xe8] sm:$0xff]
        %v923 = vld [vmem:[#allocation7 + $0xf0] sm:$0xff]
        %v924 = vld [vmem:[#allocation7 + $0xf8] sm:$0xff]
        %v925 = vld [vmem:[#allocation7 + $0x100] sm:$0xff]
        %v926 = vld [vmem:[#allocation7 + $0x108] sm:$0xff]
        %v927 = vld [vmem:[#allocation7 + $0x110] sm:$0xff]
        %v928 = vld [vmem:[#allocation7 + $0x118] sm:$0xff]
        %v929 = vld [vmem:[#allocation7 + $0x120] sm:$0xff]
        %v930 = vld [vmem:[#allocation7 + $0x128] sm:$0xff]
        %v931 = vld [vmem:[#allocation7 + $0x130] sm:$0xff]
        %v932 = vld [vmem:[#allocation7 + $0x138] sm:$0xff]
        %v933 = vld [vmem:[#allocation7 + $0x140] sm:$0xff]
        %v934 = vld [vmem:[#allocation7 + $0x148] sm:$0xff]
        %v935 = vld [vmem:[#allocation7 + $0x150] sm:$0xff]
        %v936 = vld [vmem:[#allocation7 + $0x158] sm:$0xff]
        %v937 = vld [vmem:[#allocation7 + $0x160] sm:$0xff]
        %v938 = vld [vmem:[#allocation7 + $0x168] sm:$0xff]
        %v939 = vld [vmem:[#allocation7 + $0x170] sm:$0xff]
        %v940 = vld [vmem:[#allocation7 + $0x178] sm:$0xff]
        %v941 = vld [vmem:[#allocation7 + $0x180] sm:$0xff]
        %v942 = vld [vmem:[#allocation7 + $0x188] sm:$0xff]
        %v943 = vld [vmem:[#allocation7 + $0x190] sm:$0xff]
        %v944 = vld [vmem:[#allocation7 + $0x198] sm:$0xff]
        %v945 = vld [vmem:[#allocation7 + $0x1a0] sm:$0xff]
        %v946 = vld [vmem:[#allocation7 + $0x1a8] sm:$0xff]
        %v947 = vld [vmem:[#allocation7 + $0x1b0] sm:$0xff]
        %v948 = vld [vmem:[#allocation7 + $0x1b8] sm:$0xff]
        %v949 = vld [vmem:[#allocation7 + $0x1c0] sm:$0xff]
        %v950 = vld [vmem:[#allocation7 + $0x1c8] sm:$0xff]
        %v951 = vld [vmem:[#allocation7 + $0x1d0] sm:$0xff]
        %v952 = vld [vmem:[#allocation7 + $0x1d8] sm:$0xff]
        %v953 = vld [vmem:[#allocation7 + $0x1e0] sm:$0xff]
        %v954 = vld [vmem:[#allocation7 + $0x1e8] sm:$0xff]
        %v955 = vld [vmem:[#allocation7 + $0x1f0] sm:$0xff]
        %v956 = vld [vmem:[#allocation7 + $0x1f8] sm:$0xff]
        %v957 = vld [vmem:[#allocation7 + $0x200] sm:$0xff]
        %v958 = vld [vmem:[#allocation7 + $0x208] sm:$0xff]
        %v959 = vld [vmem:[#allocation7 + $0x210] sm:$0xff]
        %v960 = vld [vmem:[#allocation7 + $0x218] sm:$0xff]
        %v961 = vld [vmem:[#allocation7 + $0x220] sm:$0xff]
        %v962 = vld [vmem:[#allocation7 + $0x228] sm:$0xff]
        %v963 = vld [vmem:[#allocation7 + $0x230] sm:$0xff]
        %v964 = vld [vmem:[#allocation7 + $0x238] sm:$0xff]
        %v965 = vld [vmem:[#allocation7 + $0x240] sm:$0xff]
        %v966 = vld [vmem:[#allocation7 + $0x248] sm:$0xff]
        %v967 = vld [vmem:[#allocation7 + $0x250] sm:$0xff]
        %v968 = vld [vmem:[#allocation7 + $0x258] sm:$0xff]
        %v969 = vld [vmem:[#allocation7 + $0x260] sm:$0xff]
        %v970 = vld [vmem:[#allocation7 + $0x268] sm:$0xff]
        %v971 = vld [vmem:[#allocation7 + $0x270] sm:$0xff]
        %v972 = vld [vmem:[#allocation7 + $0x278] sm:$0xff]
        %v973 = vld [vmem:[#allocation7 + $0x280] sm:$0xff]
        %v974 = vld [vmem:[#allocation7 + $0x288] sm:$0xff]
        %v975 = vld [vmem:[#allocation7 + $0x290] sm:$0xff]
        %v976 = vld [vmem:[#allocation7 + $0x298] sm:$0xff]
        %v977 = vld [vmem:[#allocation7 + $0x2a0] sm:$0xff]
        %v978 = vld [vmem:[#allocation7 + $0x2a8] sm:$0xff]
        %v979 = vld [vmem:[#allocation7 + $0x2b0] sm:$0xff]
        %v980 = vld [vmem:[#allocation7 + $0x2b8] sm:$0xff]
        %v981 = vld [vmem:[#allocation7 + $0x2c0] sm:$0xff]
        %v982 = vld [vmem:[#allocation7 + $0x2c8] sm:$0xff]
        %v983 = vld [vmem:[#allocation7 + $0x2d0] sm:$0xff]
        %v984 = vld [vmem:[#allocation7 + $0x2d8] sm:$0xff]
        %v985 = vld [vmem:[#allocation7 + $0x2e0] sm:$0xff]
        %v986 = vld [vmem:[#allocation7 + $0x2e8] sm:$0xff]
        %v987 = vld [vmem:[#allocation7 + $0x2f0] sm:$0xff]
        %v988 = vld [vmem:[#allocation7 + $0x2f8] sm:$0xff]
        %v989 = vld [vmem:[#allocation7 + $0x300] sm:$0xff]
        %v990 = vld [vmem:[#allocation7 + $0x308] sm:$0xff]
        %v991 = vld [vmem:[#allocation7 + $0x310] sm:$0xff]
        %v992 = vld [vmem:[#allocation7 + $0x318] sm:$0xff]
        %v993 = vld [vmem:[#allocation7 + $0x320] sm:$0xff]
        %v994 = vld [vmem:[#allocation7 + $0x328] sm:$0xff]
        %v995 = vld [vmem:[#allocation7 + $0x330] sm:$0xff]
        %v996 = vld [vmem:[#allocation7 + $0x338] sm:$0xff]
        %v997 = vld [vmem:[#allocation7 + $0x340] sm:$0xff]
        %v998 = vld [vmem:[#allocation7 + $0x348] sm:$0xff]
        %v999 = vld [vmem:[#allocation7 + $0x350] sm:$0xff]
        %v1000 = vld [vmem:[#allocation7 + $0x358] sm:$0xff]
        %v1001 = vld [vmem:[#allocation7 + $0x360] sm:$0xff]
        %v1002 = vld [vmem:[#allocation7 + $0x368] sm:$0xff]
        %v1003 = vld [vmem:[#allocation7 + $0x370] sm:$0xff]
        %v1004 = vld [vmem:[#allocation7 + $0x378] sm:$0xff]
        %v1005 = vld [vmem:[#allocation7 + $0x380] sm:$0xff]
        %v1006 = vld [vmem:[#allocation7 + $0x388] sm:$0xff]
        %v1007 = vld [vmem:[#allocation7 + $0x390] sm:$0xff]
        %v1008 = vld [vmem:[#allocation7 + $0x398] sm:$0xff]
        %v1009 = vld [vmem:[#allocation7 + $0x3a0] sm:$0xff]
        %v1010 = vld [vmem:[#allocation7 + $0x3a8] sm:$0xff]
        %v1011 = vld [vmem:[#allocation7 + $0x3b0] sm:$0xff]
        %v1012 = vld [vmem:[#allocation7 + $0x3b8] sm:$0xff]
        %v1013 = vld [vmem:[#allocation7 + $0x3c0] sm:$0xff]
        %v1014 = vld [vmem:[#allocation7 + $0x3c8] sm:$0xff]
        %v1015 = vld [vmem:[#allocation7 + $0x3d0] sm:$0xff]
        %v1016 = vld [vmem:[#allocation7 + $0x3d8] sm:$0xff]
        %v1017 = vld [vmem:[#allocation7 + $0x3e0] sm:$0xff]
        %v1018 = vld [vmem:[#allocation7 + $0x3e8] sm:$0xff]
        %v1019 = vld [vmem:[#allocation7 + $0x3f0] sm:$0xff]
        %v1020 = vld [vmem:[#allocation7 + $0x3f8] sm:$0xff]
        %v1149 = vunpack.c.l.b16 %v893
        %v1150 = vunpack.c.h.b16 %v893
        %v1151 = vunpack.c.l.b16 %v894
        %v1152 = vunpack.c.h.b16 %v894
        %v1153 = vunpack.c.l.b16 %v895
        %v1154 = vunpack.c.h.b16 %v895
        %v1155 = vunpack.c.l.b16 %v896
        %v1156 = vunpack.c.h.b16 %v896
        %v1157 = vunpack.c.l.b16 %v897
        %v1158 = vunpack.c.h.b16 %v897
        %v1159 = vunpack.c.l.b16 %v898
        %v1160 = vunpack.c.h.b16 %v898
        %v1161 = vunpack.c.l.b16 %v899
        %v1162 = vunpack.c.h.b16 %v899
        %v1163 = vunpack.c.l.b16 %v900
        %v1164 = vunpack.c.h.b16 %v900
        %v1165 = vunpack.c.l.b16 %v901
        %v1166 = vunpack.c.h.b16 %v901
        %v1167 = vunpack.c.l.b16 %v902
        %v1168 = vunpack.c.h.b16 %v902
        %v1169 = vunpack.c.l.b16 %v903
        %v1170 = vunpack.c.h.b16 %v903
        %v1171 = vunpack.c.l.b16 %v904
        %v1172 = vunpack.c.h.b16 %v904
        %v1173 = vunpack.c.l.b16 %v905
        %v1174 = vunpack.c.h.b16 %v905
        %v1175 = vunpack.c.l.b16 %v906
        %v1176 = vunpack.c.h.b16 %v906
        %v1177 = vunpack.c.l.b16 %v907
        %v1178 = vunpack.c.h.b16 %v907
        %v1179 = vunpack.c.l.b16 %v908
        %v1180 = vunpack.c.h.b16 %v908
        %v1181 = vunpack.c.l.b16 %v909
        %v1182 = vunpack.c.h.b16 %v909
        %v1183 = vunpack.c.l.b16 %v910
        %v1184 = vunpack.c.h.b16 %v910
        %v1185 = vunpack.c.l.b16 %v911
        %v1186 = vunpack.c.h.b16 %v911
        %v1187 = vunpack.c.l.b16 %v912
        %v1188 = vunpack.c.h.b16 %v912
        %v1189 = vunpack.c.l.b16 %v913
        %v1190 = vunpack.c.h.b16 %v913
        %v1191 = vunpack.c.l.b16 %v914
        %v1192 = vunpack.c.h.b16 %v914
        %v1193 = vunpack.c.l.b16 %v915
        %v1194 = vunpack.c.h.b16 %v915
        %v1195 = vunpack.c.l.b16 %v916
        %v1196 = vunpack.c.h.b16 %v916
        %v1197 = vunpack.c.l.b16 %v917
        %v1198 = vunpack.c.h.b16 %v917
        %v1199 = vunpack.c.l.b16 %v918
        %v1200 = vunpack.c.h.b16 %v918
        %v1201 = vunpack.c.l.b16 %v919
        %v1202 = vunpack.c.h.b16 %v919
        %v1203 = vunpack.c.l.b16 %v920
        %v1204 = vunpack.c.h.b16 %v920
        %v1205 = vunpack.c.l.b16 %v921
        %v1206 = vunpack.c.h.b16 %v921
        %v1207 = vunpack.c.l.b16 %v922
        %v1208 = vunpack.c.h.b16 %v922
        %v1209 = vunpack.c.l.b16 %v923
        %v1210 = vunpack.c.h.b16 %v923
        %v1211 = vunpack.c.l.b16 %v924
        %v1212 = vunpack.c.h.b16 %v924
        %v1213 = vunpack.c.l.b16 %v925
        %v1214 = vunpack.c.h.b16 %v925
        %v1215 = vunpack.c.l.b16 %v926
        %v1216 = vunpack.c.h.b16 %v926
        %v1217 = vunpack.c.l.b16 %v927
        %v1218 = vunpack.c.h.b16 %v927
        %v1219 = vunpack.c.l.b16 %v928
        %v1220 = vunpack.c.h.b16 %v928
        %v1221 = vunpack.c.l.b16 %v929
        %v1222 = vunpack.c.h.b16 %v929
        %v1223 = vunpack.c.l.b16 %v930
        %v1224 = vunpack.c.h.b16 %v930
        %v1225 = vunpack.c.l.b16 %v931
        %v1226 = vunpack.c.h.b16 %v931
        %v1227 = vunpack.c.l.b16 %v932
        %v1228 = vunpack.c.h.b16 %v932
        %v1229 = vunpack.c.l.b16 %v933
        %v1230 = vunpack.c.h.b16 %v933
        %v1231 = vunpack.c.l.b16 %v934
        %v1232 = vunpack.c.h.b16 %v934
        %v1233 = vunpack.c.l.b16 %v935
        %v1234 = vunpack.c.h.b16 %v935
        %v1235 = vunpack.c.l.b16 %v936
        %v1236 = vunpack.c.h.b16 %v936
        %v1237 = vunpack.c.l.b16 %v937
        %v1238 = vunpack.c.h.b16 %v937
        %v1239 = vunpack.c.l.b16 %v938
        %v1240 = vunpack.c.h.b16 %v938
        %v1241 = vunpack.c.l.b16 %v939
        %v1242 = vunpack.c.h.b16 %v939
        %v1243 = vunpack.c.l.b16 %v940
        %v1244 = vunpack.c.h.b16 %v940
        %v1245 = vunpack.c.l.b16 %v941
        %v1246 = vunpack.c.h.b16 %v941
        %v1247 = vunpack.c.l.b16 %v942
        %v1248 = vunpack.c.h.b16 %v942
        %v1249 = vunpack.c.l.b16 %v943
        %v1250 = vunpack.c.h.b16 %v943
        %v1251 = vunpack.c.l.b16 %v944
        %v1252 = vunpack.c.h.b16 %v944
        %v1253 = vunpack.c.l.b16 %v945
        %v1254 = vunpack.c.h.b16 %v945
        %v1255 = vunpack.c.l.b16 %v946
        %v1256 = vunpack.c.h.b16 %v946
        %v1257 = vunpack.c.l.b16 %v947
        %v1258 = vunpack.c.h.b16 %v947
        %v1259 = vunpack.c.l.b16 %v948
        %v1260 = vunpack.c.h.b16 %v948
        %v1261 = vunpack.c.l.b16 %v949
        %v1262 = vunpack.c.h.b16 %v949
        %v1263 = vunpack.c.l.b16 %v950
        %v1264 = vunpack.c.h.b16 %v950
        %v1265 = vunpack.c.l.b16 %v951
        %v1266 = vunpack.c.h.b16 %v951
        %v1267 = vunpack.c.l.b16 %v952
        %v1268 = vunpack.c.h.b16 %v952
        %v1269 = vunpack.c.l.b16 %v953
        %v1270 = vunpack.c.h.b16 %v953
        %v1271 = vunpack.c.l.b16 %v954
        %v1272 = vunpack.c.h.b16 %v954
        %v1273 = vunpack.c.l.b16 %v955
        %v1274 = vunpack.c.h.b16 %v955
        %v1275 = vunpack.c.l.b16 %v956
        %v1276 = vunpack.c.h.b16 %v956
        %v1277 = vunpack.c.l.b16 %v957
        %v1278 = vunpack.c.h.b16 %v957
        %v1279 = vunpack.c.l.b16 %v958
        %v1280 = vunpack.c.h.b16 %v958
        %v1281 = vunpack.c.l.b16 %v959
        %v1282 = vunpack.c.h.b16 %v959
        %v1283 = vunpack.c.l.b16 %v960
        %v1284 = vunpack.c.h.b16 %v960
        %v1285 = vunpack.c.l.b16 %v961
        %v1286 = vunpack.c.h.b16 %v961
        %v1287 = vunpack.c.l.b16 %v962
        %v1288 = vunpack.c.h.b16 %v962
        %v1289 = vunpack.c.l.b16 %v963
        %v1290 = vunpack.c.h.b16 %v963
        %v1291 = vunpack.c.l.b16 %v964
        %v1292 = vunpack.c.h.b16 %v964
        %v1293 = vunpack.c.l.b16 %v965
        %v1294 = vunpack.c.h.b16 %v965
        %v1295 = vunpack.c.l.b16 %v966
        %v1296 = vunpack.c.h.b16 %v966
        %v1297 = vunpack.c.l.b16 %v967
        %v1298 = vunpack.c.h.b16 %v967
        %v1299 = vunpack.c.l.b16 %v968
        %v1300 = vunpack.c.h.b16 %v968
        %v1301 = vunpack.c.l.b16 %v969
        %v1302 = vunpack.c.h.b16 %v969
        %v1303 = vunpack.c.l.b16 %v970
        %v1304 = vunpack.c.h.b16 %v970
        %v1305 = vunpack.c.l.b16 %v971
        %v1306 = vunpack.c.h.b16 %v971
        %v1307 = vunpack.c.l.b16 %v972
        %v1308 = vunpack.c.h.b16 %v972
        %v1309 = vunpack.c.l.b16 %v973
        %v1310 = vunpack.c.h.b16 %v973
        %v1311 = vunpack.c.l.b16 %v974
        %v1312 = vunpack.c.h.b16 %v974
        %v1313 = vunpack.c.l.b16 %v975
        %v1314 = vunpack.c.h.b16 %v975
        %v1315 = vunpack.c.l.b16 %v976
        %v1316 = vunpack.c.h.b16 %v976
        %v1317 = vunpack.c.l.b16 %v977
        %v1318 = vunpack.c.h.b16 %v977
        %v1319 = vunpack.c.l.b16 %v978
        %v1320 = vunpack.c.h.b16 %v978
        %v1321 = vunpack.c.l.b16 %v979
        %v1322 = vunpack.c.h.b16 %v979
        %v1323 = vunpack.c.l.b16 %v980
        %v1324 = vunpack.c.h.b16 %v980
        %v1325 = vunpack.c.l.b16 %v981
        %v1326 = vunpack.c.h.b16 %v981
        %v1327 = vunpack.c.l.b16 %v982
        %v1328 = vunpack.c.h.b16 %v982
        %v1329 = vunpack.c.l.b16 %v983
        %v1330 = vunpack.c.h.b16 %v983
        %v1331 = vunpack.c.l.b16 %v984
        %v1332 = vunpack.c.h.b16 %v984
        %v1333 = vunpack.c.l.b16 %v985
        %v1334 = vunpack.c.h.b16 %v985
        %v1335 = vunpack.c.l.b16 %v986
        %v1336 = vunpack.c.h.b16 %v986
        %v1337 = vunpack.c.l.b16 %v987
        %v1338 = vunpack.c.h.b16 %v987
        %v1339 = vunpack.c.l.b16 %v988
        %v1340 = vunpack.c.h.b16 %v988
        %v1341 = vunpack.c.l.b16 %v989
        %v1342 = vunpack.c.h.b16 %v989
        %v1343 = vunpack.c.l.b16 %v990
        %v1344 = vunpack.c.h.b16 %v990
        %v1345 = vunpack.c.l.b16 %v991
        %v1346 = vunpack.c.h.b16 %v991
        %v1347 = vunpack.c.l.b16 %v992
        %v1348 = vunpack.c.h.b16 %v992
        %v1349 = vunpack.c.l.b16 %v993
        %v1350 = vunpack.c.h.b16 %v993
        %v1351 = vunpack.c.l.b16 %v994
        %v1352 = vunpack.c.h.b16 %v994
        %v1353 = vunpack.c.l.b16 %v995
        %v1354 = vunpack.c.h.b16 %v995
        %v1355 = vunpack.c.l.b16 %v996
        %v1356 = vunpack.c.h.b16 %v996
        %v1357 = vunpack.c.l.b16 %v997
        %v1358 = vunpack.c.h.b16 %v997
        %v1359 = vunpack.c.l.b16 %v998
        %v1360 = vunpack.c.h.b16 %v998
        %v1361 = vunpack.c.l.b16 %v999
        %v1362 = vunpack.c.h.b16 %v999
        %v1363 = vunpack.c.l.b16 %v1000
        %v1364 = vunpack.c.h.b16 %v1000
        %v1365 = vunpack.c.l.b16 %v1001
        %v1366 = vunpack.c.h.b16 %v1001
        %v1367 = vunpack.c.l.b16 %v1002
        %v1368 = vunpack.c.h.b16 %v1002
        %v1369 = vunpack.c.l.b16 %v1003
        %v1370 = vunpack.c.h.b16 %v1003
        %v1371 = vunpack.c.l.b16 %v1004
        %v1372 = vunpack.c.h.b16 %v1004
        %v1373 = vunpack.c.l.b16 %v1005
        %v1374 = vunpack.c.h.b16 %v1005
        %v1375 = vunpack.c.l.b16 %v1006
        %v1376 = vunpack.c.h.b16 %v1006
        %v1377 = vunpack.c.l.b16 %v1007
        %v1378 = vunpack.c.h.b16 %v1007
        %v1379 = vunpack.c.l.b16 %v1008
        %v1380 = vunpack.c.h.b16 %v1008
        %v1381 = vunpack.c.l.b16 %v1009
        %v1382 = vunpack.c.h.b16 %v1009
        %v1383 = vunpack.c.l.b16 %v1010
        %v1384 = vunpack.c.h.b16 %v1010
        %v1385 = vunpack.c.l.b16 %v1011
        %v1386 = vunpack.c.h.b16 %v1011
        %v1387 = vunpack.c.l.b16 %v1012
        %v1388 = vunpack.c.h.b16 %v1012
        %v1389 = vunpack.c.l.b16 %v1013
        %v1390 = vunpack.c.h.b16 %v1013
        %v1391 = vunpack.c.l.b16 %v1014
        %v1392 = vunpack.c.h.b16 %v1014
        %v1393 = vunpack.c.l.b16 %v1015
        %v1394 = vunpack.c.h.b16 %v1015
        %v1395 = vunpack.c.l.b16 %v1016
        %v1396 = vunpack.c.h.b16 %v1016
        %v1397 = vunpack.c.l.b16 %v1017
        %v1398 = vunpack.c.h.b16 %v1017
        %v1399 = vunpack.c.l.b16 %v1018
        %v1400 = vunpack.c.h.b16 %v1018
        %v1401 = vunpack.c.l.b16 %v1019
        %v1402 = vunpack.c.h.b16 %v1019
        %v1403 = vunpack.c.l.b16 %v1020
        %v1404 = vunpack.c.h.b16 %v1020
        %v1405 = vpack.c.b16 %v1153, %v1149
        %v1406 = vpack.c.b16 %v1154, %v1150
        %v1407 = vpack.c.b16 %v1155, %v1151
        %v1408 = vpack.c.b16 %v1156, %v1152
        %v1409 = vpack.c.b16 %v1161, %v1157
        %v1410 = vpack.c.b16 %v1162, %v1158
        %v1411 = vpack.c.b16 %v1163, %v1159
        %v1412 = vpack.c.b16 %v1164, %v1160
        %v1413 = vpack.c.b16 %v1169, %v1165
        %v1414 = vpack.c.b16 %v1170, %v1166
        %v1415 = vpack.c.b16 %v1171, %v1167
        %v1416 = vpack.c.b16 %v1172, %v1168
        %v1417 = vpack.c.b16 %v1177, %v1173
        %v1418 = vpack.c.b16 %v1178, %v1174
        %v1419 = vpack.c.b16 %v1179, %v1175
        %v1420 = vpack.c.b16 %v1180, %v1176
        %v1421 = vpack.c.b16 %v1185, %v1181
        %v1422 = vpack.c.b16 %v1186, %v1182
        %v1423 = vpack.c.b16 %v1187, %v1183
        %v1424 = vpack.c.b16 %v1188, %v1184
        %v1425 = vpack.c.b16 %v1193, %v1189
        %v1426 = vpack.c.b16 %v1194, %v1190
        %v1427 = vpack.c.b16 %v1195, %v1191
        %v1428 = vpack.c.b16 %v1196, %v1192
        %v1429 = vpack.c.b16 %v1201, %v1197
        %v1430 = vpack.c.b16 %v1202, %v1198
        %v1431 = vpack.c.b16 %v1203, %v1199
        %v1432 = vpack.c.b16 %v1204, %v1200
        %v1433 = vpack.c.b16 %v1209, %v1205
        %v1434 = vpack.c.b16 %v1210, %v1206
        %v1435 = vpack.c.b16 %v1211, %v1207
        %v1436 = vpack.c.b16 %v1212, %v1208
        %v1437 = vpack.c.b16 %v1217, %v1213
        %v1438 = vpack.c.b16 %v1218, %v1214
        %v1439 = vpack.c.b16 %v1219, %v1215
        %v1440 = vpack.c.b16 %v1220, %v1216
        %v1441 = vpack.c.b16 %v1225, %v1221
        %v1442 = vpack.c.b16 %v1226, %v1222
        %v1443 = vpack.c.b16 %v1227, %v1223
        %v1444 = vpack.c.b16 %v1228, %v1224
        %v1445 = vpack.c.b16 %v1233, %v1229
        %v1446 = vpack.c.b16 %v1234, %v1230
        %v1447 = vpack.c.b16 %v1235, %v1231
        %v1448 = vpack.c.b16 %v1236, %v1232
        %v1449 = vpack.c.b16 %v1241, %v1237
        %v1450 = vpack.c.b16 %v1242, %v1238
        %v1451 = vpack.c.b16 %v1243, %v1239
        %v1452 = vpack.c.b16 %v1244, %v1240
        %v1453 = vpack.c.b16 %v1249, %v1245
        %v1454 = vpack.c.b16 %v1250, %v1246
        %v1455 = vpack.c.b16 %v1251, %v1247
        %v1456 = vpack.c.b16 %v1252, %v1248
        %v1457 = vpack.c.b16 %v1257, %v1253
        %v1458 = vpack.c.b16 %v1258, %v1254
        %v1459 = vpack.c.b16 %v1259, %v1255
        %v1460 = vpack.c.b16 %v1260, %v1256
        %v1461 = vpack.c.b16 %v1265, %v1261
        %v1462 = vpack.c.b16 %v1266, %v1262
        %v1463 = vpack.c.b16 %v1267, %v1263
        %v1464 = vpack.c.b16 %v1268, %v1264
        %v1465 = vpack.c.b16 %v1273, %v1269
        %v1466 = vpack.c.b16 %v1274, %v1270
        %v1467 = vpack.c.b16 %v1275, %v1271
        %v1468 = vpack.c.b16 %v1276, %v1272
        %v1469 = vpack.c.b16 %v1281, %v1277
        %v1470 = vpack.c.b16 %v1282, %v1278
        %v1471 = vpack.c.b16 %v1283, %v1279
        %v1472 = vpack.c.b16 %v1284, %v1280
        %v1473 = vpack.c.b16 %v1289, %v1285
        %v1474 = vpack.c.b16 %v1290, %v1286
        %v1475 = vpack.c.b16 %v1291, %v1287
        %v1476 = vpack.c.b16 %v1292, %v1288
        %v1477 = vpack.c.b16 %v1297, %v1293
        %v1478 = vpack.c.b16 %v1298, %v1294
        %v1479 = vpack.c.b16 %v1299, %v1295
        %v1480 = vpack.c.b16 %v1300, %v1296
        %v1481 = vpack.c.b16 %v1305, %v1301
        %v1482 = vpack.c.b16 %v1306, %v1302
        %v1483 = vpack.c.b16 %v1307, %v1303
        %v1484 = vpack.c.b16 %v1308, %v1304
        %v1485 = vpack.c.b16 %v1313, %v1309
        %v1486 = vpack.c.b16 %v1314, %v1310
        %v1487 = vpack.c.b16 %v1315, %v1311
        %v1488 = vpack.c.b16 %v1316, %v1312
        %v1489 = vpack.c.b16 %v1321, %v1317
        %v1490 = vpack.c.b16 %v1322, %v1318
        %v1491 = vpack.c.b16 %v1323, %v1319
        %v1492 = vpack.c.b16 %v1324, %v1320
        %v1493 = vpack.c.b16 %v1329, %v1325
        %v1494 = vpack.c.b16 %v1330, %v1326
        %v1495 = vpack.c.b16 %v1331, %v1327
        %v1496 = vpack.c.b16 %v1332, %v1328
        %v1497 = vpack.c.b16 %v1337, %v1333
        %v1498 = vpack.c.b16 %v1338, %v1334
        %v1499 = vpack.c.b16 %v1339, %v1335
        %v1500 = vpack.c.b16 %v1340, %v1336
        %v1501 = vpack.c.b16 %v1345, %v1341
        %v1502 = vpack.c.b16 %v1346, %v1342
        %v1503 = vpack.c.b16 %v1347, %v1343
        %v1504 = vpack.c.b16 %v1348, %v1344
        %v1505 = vpack.c.b16 %v1353, %v1349
        %v1506 = vpack.c.b16 %v1354, %v1350
        %v1507 = vpack.c.b16 %v1355, %v1351
        %v1508 = vpack.c.b16 %v1356, %v1352
        %v1509 = vpack.c.b16 %v1361, %v1357
        %v1510 = vpack.c.b16 %v1362, %v1358
        %v1511 = vpack.c.b16 %v1363, %v1359
        %v1512 = vpack.c.b16 %v1364, %v1360
        %v1513 = vpack.c.b16 %v1369, %v1365
        %v1514 = vpack.c.b16 %v1370, %v1366
        %v1515 = vpack.c.b16 %v1371, %v1367
        %v1516 = vpack.c.b16 %v1372, %v1368
        %v1517 = vpack.c.b16 %v1377, %v1373
        %v1518 = vpack.c.b16 %v1378, %v1374
        %v1519 = vpack.c.b16 %v1379, %v1375
        %v1520 = vpack.c.b16 %v1380, %v1376
        %v1521 = vpack.c.b16 %v1385, %v1381
        %v1522 = vpack.c.b16 %v1386, %v1382
        %v1523 = vpack.c.b16 %v1387, %v1383
        %v1524 = vpack.c.b16 %v1388, %v1384
        %v1525 = vpack.c.b16 %v1393, %v1389
        %v1526 = vpack.c.b16 %v1394, %v1390
        %v1527 = vpack.c.b16 %v1395, %v1391
        %v1528 = vpack.c.b16 %v1396, %v1392
        %v1529 = vpack.c.b16 %v1401, %v1397
        %v1530 = vpack.c.b16 %v1402, %v1398
        %v1531 = vpack.c.b16 %v1403, %v1399
        %v1532 = vpack.c.b16 %v1404, %v1400
        %1661 = vmatprep.subr.bf16.mxu0 %v1406
        %1662 = vmatpush1.bf16.msra.mxu0 %v1405
        %1663 = vmatprep.subr.bf16.mxu0 %v1410
        %1664 = vmatpush1.bf16.msra.mxu0 %v1409
        %1665 = vmatprep.subr.bf16.mxu0 %v1414
        %1666 = vmatpush1.bf16.msra.mxu0 %v1413
        %1667 = vmatprep.subr.bf16.mxu0 %v1418
        %1668 = vmatpush1.bf16.msra.mxu0 %v1417
        %1669 = vmatprep.subr.bf16.mxu0 %v1422
        %1670 = vmatpush1.bf16.msra.mxu0 %v1421
        %1671 = vmatprep.subr.bf16.mxu0 %v1426
        %1672 = vmatpush1.bf16.msra.mxu0 %v1425
        %1673 = vmatprep.subr.bf16.mxu0 %v1430
        %1674 = vmatpush1.bf16.msra.mxu0 %v1429
        %1675 = vmatprep.subr.bf16.mxu0 %v1434
        %1676 = vmatpush1.bf16.msra.mxu0 %v1433
        %1677 = vmatprep.subr.bf16.mxu0 %v1438
        %1678 = vmatpush1.bf16.msra.mxu0 %v1437
        %1679 = vmatprep.subr.bf16.mxu0 %v1442
        %1680 = vmatpush1.bf16.msra.mxu0 %v1441
        %1681 = vmatprep.subr.bf16.mxu0 %v1446
        %1682 = vmatpush1.bf16.msra.mxu0 %v1445
        %1683 = vmatprep.subr.bf16.mxu0 %v1450
        %1684 = vmatpush1.bf16.msra.mxu0 %v1449
        %1685 = vmatprep.subr.bf16.mxu0 %v1454
        %1686 = vmatpush1.bf16.msra.mxu0 %v1453
        %1687 = vmatprep.subr.bf16.mxu0 %v1458
        %1688 = vmatpush1.bf16.msra.mxu0 %v1457
        %1689 = vmatprep.subr.bf16.mxu0 %v1462
        %1690 = vmatpush1.bf16.msra.mxu0 %v1461
        %1691 = vmatprep.subr.bf16.mxu0 %v1466
        %1692 = vmatpush1.bf16.msra.mxu0 %v1465
        %1693 = vmatprep.mubr.bf16.mxu0 %v890
        %1694 = vmatmul.mubr.bf16.gmra.mrb[0].mxu0 %v889
        %v1695 = vpop.f32.mrb[0].mxu0
        %v1696 = vadd.f32 0.0, %v1695
        %v1697 = vpop.f32.mrb[0].mxu0
        %v1698 = vadd.f32 0.0, %v1697
        %v1699 = vpop.f32.mrb[0].mxu0
        %v1700 = vadd.f32 0.0, %v1699
        %v1701 = vpop.f32.mrb[0].mxu0
        %v1702 = vadd.f32 0.0, %v1701
        %1703 = vdwg.mxu0
        %1704 = vmatprep.subr.bf16.mxu0 %v1470
        %1705 = vmatpush1.bf16.msra.mxu0 %v1469
        %1706 = vmatprep.subr.bf16.mxu0 %v1474
        %1707 = vmatpush1.bf16.msra.mxu0 %v1473
        %1708 = vmatprep.subr.bf16.mxu0 %v1478
        %1709 = vmatpush1.bf16.msra.mxu0 %v1477
        %1710 = vmatprep.subr.bf16.mxu0 %v1482
        %1711 = vmatpush1.bf16.msra.mxu0 %v1481
        %1712 = vmatprep.subr.bf16.mxu0 %v1486
        %1713 = vmatpush1.bf16.msra.mxu0 %v1485
        %1714 = vmatprep.subr.bf16.mxu0 %v1490
        %1715 = vmatpush1.bf16.msra.mxu0 %v1489
        %1716 = vmatprep.subr.bf16.mxu0 %v1494
        %1717 = vmatpush1.bf16.msra.mxu0 %v1493
        %1718 = vmatprep.subr.bf16.mxu0 %v1498
        %1719 = vmatpush1.bf16.msra.mxu0 %v1497
        %1720 = vmatprep.subr.bf16.mxu0 %v1502
        %1721 = vmatpush1.bf16.msra.mxu0 %v1501
        %1722 = vmatprep.subr.bf16.mxu0 %v1506
        %1723 = vmatpush1.bf16.msra.mxu0 %v1505
        %1724 = vmatprep.subr.bf16.mxu0 %v1510
        %1725 = vmatpush1.bf16.msra.mxu0 %v1509
        %1726 = vmatprep.subr.bf16.mxu0 %v1514
        %1727 = vmatpush1.bf16.msra.mxu0 %v1513
        %1728 = vmatprep.subr.bf16.mxu0 %v1518
        %1729 = vmatpush1.bf16.msra.mxu0 %v1517
        %1730 = vmatprep.subr.bf16.mxu0 %v1522
        %1731 = vmatpush1.bf16.msra.mxu0 %v1521
        %1732 = vmatprep.subr.bf16.mxu0 %v1526
        %1733 = vmatpush1.bf16.msra.mxu0 %v1525
        %1734 = vmatprep.subr.bf16.mxu0 %v1530
        %1735 = vmatpush1.bf16.msra.mxu0 %v1529
        %1736 = vmatprep.mubr.bf16.mxu0 %v892
        %1737 = vmatmul.mubr.bf16.gmra.mrb[0].mxu0 %v891
        %v1738 = vpop.f32.mrb[0].mxu0
        %v1739 = vadd.f32 %v1696, %v1738
        %v1740 = vpop.f32.mrb[0].mxu0
        %v1741 = vadd.f32 %v1698, %v1740
        %v1742 = vpop.f32.mrb[0].mxu0
        %v1743 = vadd.f32 %v1700, %v1742
        %v1744 = vpop.f32.mrb[0].mxu0
        %v1745 = vadd.f32 %v1702, %v1744
        %1746 = vdwg.mxu0
        %1747 = vmatprep.subr.bf16.mxu0 %v1408
        %1748 = vmatpush1.bf16.msra.mxu0 %v1407
        %1749 = vmatprep.subr.bf16.mxu0 %v1412
        %1750 = vmatpush1.bf16.msra.mxu0 %v1411
        %1751 = vmatprep.subr.bf16.mxu0 %v1416
        %1752 = vmatpush1.bf16.msra.mxu0 %v1415
        %1753 = vmatprep.subr.bf16.mxu0 %v1420
        %1754 = vmatpush1.bf16.msra.mxu0 %v1419
        %1755 = vmatprep.subr.bf16.mxu0 %v1424
        %1756 = vmatpush1.bf16.msra.mxu0 %v1423
        %1757 = vmatprep.subr.bf16.mxu0 %v1428
        %1758 = vmatpush1.bf16.msra.mxu0 %v1427
        %1759 = vmatprep.subr.bf16.mxu0 %v1432
        %1760 = vmatpush1.bf16.msra.mxu0 %v1431
        %1761 = vmatprep.subr.bf16.mxu0 %v1436
        %1762 = vmatpush1.bf16.msra.mxu0 %v1435
        %1763 = vmatprep.subr.bf16.mxu0 %v1440
        %1764 = vmatpush1.bf16.msra.mxu0 %v1439
        %1765 = vmatprep.subr.bf16.mxu0 %v1444
        %1766 = vmatpush1.bf16.msra.mxu0 %v1443
        %1767 = vmatprep.subr.bf16.mxu0 %v1448
        %1768 = vmatpush1.bf16.msra.mxu0 %v1447
        %1769 = vmatprep.subr.bf16.mxu0 %v1452
        %1770 = vmatpush1.bf16.msra.mxu0 %v1451
        %1771 = vmatprep.subr.bf16.mxu0 %v1456
        %1772 = vmatpush1.bf16.msra.mxu0 %v1455
        %1773 = vmatprep.subr.bf16.mxu0 %v1460
        %1774 = vmatpush1.bf16.msra.mxu0 %v1459
        %1775 = vmatprep.subr.bf16.mxu0 %v1464
        %1776 = vmatpush1.bf16.msra.mxu0 %v1463
        %1777 = vmatprep.subr.bf16.mxu0 %v1468
        %1778 = vmatpush1.bf16.msra.mxu0 %v1467
        %1779 = vmatprep.mubr.bf16.mxu0 %v890
        %1780 = vmatmul.mubr.bf16.gmra.mrb[0].mxu0 %v889
        %v1781 = vpop.f32.mrb[0].mxu0
        %v1782 = vadd.f32 0.0, %v1781
        %v1783 = vpop.f32.mrb[0].mxu0
        %v1784 = vadd.f32 0.0, %v1783
        %v1785 = vpop.f32.mrb[0].mxu0
        %v1786 = vadd.f32 0.0, %v1785
        %v1787 = vpop.f32.mrb[0].mxu0
        %v1788 = vadd.f32 0.0, %v1787
        %1789 = vdwg.mxu0
        %1790 = vmatprep.subr.bf16.mxu0 %v1472
        %1791 = vmatpush1.bf16.msra.mxu0 %v1471
        %1792 = vmatprep.subr.bf16.mxu0 %v1476
        %1793 = vmatpush1.bf16.msra.mxu0 %v1475
        %1794 = vmatprep.subr.bf16.mxu0 %v1480
        %1795 = vmatpush1.bf16.msra.mxu0 %v1479
        %1796 = vmatprep.subr.bf16.mxu0 %v1484
        %1797 = vmatpush1.bf16.msra.mxu0 %v1483
        %1798 = vmatprep.subr.bf16.mxu0 %v1488
        %1799 = vmatpush1.bf16.msra.mxu0 %v1487
        %1800 = vmatprep.subr.bf16.mxu0 %v1492
        %1801 = vmatpush1.bf16.msra.mxu0 %v1491
        %1802 = vmatprep.subr.bf16.mxu0 %v1496
        %1803 = vmatpush1.bf16.msra.mxu0 %v1495
        %1804 = vmatprep.subr.bf16.mxu0 %v1500
        %1805 = vmatpush1.bf16.msra.mxu0 %v1499
        %1806 = vmatprep.subr.bf16.mxu0 %v1504
        %1807 = vmatpush1.bf16.msra.mxu0 %v1503
        %1808 = vmatprep.subr.bf16.mxu0 %v1508
        %1809 = vmatpush1.bf16.msra.mxu0 %v1507
        %1810 = vmatprep.subr.bf16.mxu0 %v1512
        %1811 = vmatpush1.bf16.msra.mxu0 %v1511
        %1812 = vmatprep.subr.bf16.mxu0 %v1516
        %1813 = vmatpush1.bf16.msra.mxu0 %v1515
        %1814 = vmatprep.subr.bf16.mxu0 %v1520
        %1815 = vmatpush1.bf16.msra.mxu0 %v1519
        %1816 = vmatprep.subr.bf16.mxu0 %v1524
        %1817 = vmatpush1.bf16.msra.mxu0 %v1523
        %1818 = vmatprep.subr.bf16.mxu0 %v1528
        %1819 = vmatpush1.bf16.msra.mxu0 %v1527
        %1820 = vmatprep.subr.bf16.mxu0 %v1532
        %1821 = vmatpush1.bf16.msra.mxu0 %v1531
        %1822 = vmatprep.mubr.bf16.mxu0 %v892
        %1823 = vmatmul.mubr.bf16.gmra.mrb[0].mxu0 %v891
        %v1824 = vpop.f32.mrb[0].mxu0
        %v1825 = vadd.f32 %v1782, %v1824
        %v1826 = vpop.f32.mrb[0].mxu0
        %v1827 = vadd.f32 %v1784, %v1826
        %v1828 = vpop.f32.mrb[0].mxu0
        %v1829 = vadd.f32 %v1786, %v1828
        %v1830 = vpop.f32.mrb[0].mxu0
        %v1831 = vadd.f32 %v1788, %v1830
        %1832 = vdwg.mxu0
        %v1833 = vpack.c.bf16 %v1743, %v1739
        %v1834 = vpack.c.bf16 %v1745, %v1741
        %v1835 = vpack.c.bf16 %v1829, %v1825
        %v1836 = vpack.c.bf16 %v1831, %v1827
        %v1837 = vld [vmem:[%s4] sm:$0xf]
        %v1840 = vunpack.c.l.s4 1966171168
        %v1841 = vunpack.c.0.s8 %v1840
        %v1842 = vlaneseq
        %v1843 = vshrl.u32 %v1842, 7
        %v1844 = vsub.s32 %v1841, %v1843
        %v1845 = vrot.slane %v1837, %v1844
        %v1846 = vcombine.high %v1845, %v1845
        %v1848 = vunpack.c.l.s4 1966171168
        %v1849 = vunpack.c.0.s8 %v1848
        %v1850 = vlaneseq
        %v1851 = vshrl.u32 %v1850, 7
        %v1852 = vsub.s32 %v1849, %v1851
        %v1853 = vrot.slane %v1845, %v1852
        %v1855 = vunpack.c.l.s4 1966171168
        %v1856 = vunpack.c.0.s8 %v1855
        %v1857 = vlaneseq
        %v1858 = vshrl.u32 %v1857, 7
        %v1859 = vsub.s32 %v1856, %v1858
        %v1860 = vrot.slane %v1846, %v1859
        %v1861 = vcombine.high %v1853, %v1853
        %v1862 = vcombine.high %v1860, %v1860
        %v1864 = vpack.i.b16 %v1853, %v1853
        %v1866 = vlaneseq
        %v1867 = vshrl.u32 %v1866, 7
        %v1868 = vsub.s32 0, %v1867
        %v1869 = vrot.slane %v1864, %v1868
        %v1871 = vpack.i.b16 %v1860, %v1860
        %v1873 = vlaneseq
        %v1874 = vshrl.u32 %v1873, 7
        %v1875 = vsub.s32 0, %v1874
        %v1876 = vrot.slane %v1871, %v1875
        %v1878 = vpack.i.b16 %v1861, %v1861
        %v1880 = vlaneseq
        %v1881 = vshrl.u32 %v1880, 7
        %v1882 = vsub.s32 0, %v1881
        %v1883 = vrot.slane %v1878, %v1882
        %v1885 = vpack.i.b16 %v1862, %v1862
        %v1887 = vlaneseq
        %v1888 = vshrl.u32 %v1887, 7
        %v1889 = vsub.s32 0, %v1888
        %v1890 = vrot.slane %v1885, %v1889
        %v1891 = vadd.bf16 %v1833, %v1869
        %v1892 = vadd.bf16 %v1834, %v1876
        %v1893 = vadd.bf16 %v1835, %v1883
        %v1894 = vadd.bf16 %v1836, %v1890
        %v1895 = vmax.bf16 %v1891, 0
        %v1896 = vmax.bf16 %v1892, 0
        %v1897 = vmax.bf16 %v1893, 0
        %v1898 = vmax.bf16 %v1894, 0
        %v1899 = vld [vmem:[#allocation8] sm:$0xf]
        %v1900 = vld [vmem:[#allocation8 + $0x4] sm:$0xf]
        %v1901 = vld [vmem:[#allocation8 + $0x8] sm:$0xf]
        %v1902 = vld [vmem:[#allocation8 + $0xc] sm:$0xf]
        %v1903 = vld [vmem:[#allocation8 + $0x10] sm:$0xf]
        %v1904 = vld [vmem:[#allocation8 + $0x14] sm:$0xf]
        %v1905 = vld [vmem:[#allocation8 + $0x18] sm:$0xf]
        %v1906 = vld [vmem:[#allocation8 + $0x1c] sm:$0xf]
        %v1907 = vld [vmem:[#allocation8 + $0x20] sm:$0xf]
        %v1908 = vld [vmem:[#allocation8 + $0x24] sm:$0xf]
        %v1909 = vld [vmem:[#allocation8 + $0x28] sm:$0xf]
        %v1910 = vld [vmem:[#allocation8 + $0x2c] sm:$0xf]
        %v1911 = vld [vmem:[#allocation8 + $0x30] sm:$0xf]
        %v1912 = vld [vmem:[#allocation8 + $0x34] sm:$0xf]
        %v1913 = vld [vmem:[#allocation8 + $0x38] sm:$0xf]
        %v1914 = vld [vmem:[#allocation8 + $0x3c] sm:$0xf]
        %v1915 = vld [vmem:[#allocation8 + $0x40] sm:$0xf]
        %v1916 = vld [vmem:[#allocation8 + $0x44] sm:$0xf]
        %v1917 = vld [vmem:[#allocation8 + $0x48] sm:$0xf]
        %v1918 = vld [vmem:[#allocation8 + $0x4c] sm:$0xf]
        %v1919 = vld [vmem:[#allocation8 + $0x50] sm:$0xf]
        %v1920 = vld [vmem:[#allocation8 + $0x54] sm:$0xf]
        %v1921 = vld [vmem:[#allocation8 + $0x58] sm:$0xf]
        %v1922 = vld [vmem:[#allocation8 + $0x5c] sm:$0xf]
        %v1923 = vld [vmem:[#allocation8 + $0x60] sm:$0xf]
        %v1924 = vld [vmem:[#allocation8 + $0x64] sm:$0xf]
        %v1925 = vld [vmem:[#allocation8 + $0x68] sm:$0xf]
        %v1926 = vld [vmem:[#allocation8 + $0x6c] sm:$0xf]
        %v1927 = vld [vmem:[#allocation8 + $0x70] sm:$0xf]
        %v1928 = vld [vmem:[#allocation8 + $0x74] sm:$0xf]
        %v1929 = vld [vmem:[#allocation8 + $0x78] sm:$0xf]
        %v1930 = vld [vmem:[#allocation8 + $0x7c] sm:$0xf]
        %v1931 = vld [vmem:[#allocation8 + $0x80] sm:$0xf]
        %v1932 = vld [vmem:[#allocation8 + $0x84] sm:$0xf]
        %v1933 = vld [vmem:[#allocation8 + $0x88] sm:$0xf]
        %v1934 = vld [vmem:[#allocation8 + $0x8c] sm:$0xf]
        %v1935 = vld [vmem:[#allocation8 + $0x90] sm:$0xf]
        %v1936 = vld [vmem:[#allocation8 + $0x94] sm:$0xf]
        %v1937 = vld [vmem:[#allocation8 + $0x98] sm:$0xf]
        %v1938 = vld [vmem:[#allocation8 + $0x9c] sm:$0xf]
        %v1939 = vld [vmem:[#allocation8 + $0xa0] sm:$0xf]
        %v1940 = vld [vmem:[#allocation8 + $0xa4] sm:$0xf]
        %v1941 = vld [vmem:[#allocation8 + $0xa8] sm:$0xf]
        %v1942 = vld [vmem:[#allocation8 + $0xac] sm:$0xf]
        %v1943 = vld [vmem:[#allocation8 + $0xb0] sm:$0xf]
        %v1944 = vld [vmem:[#allocation8 + $0xb4] sm:$0xf]
        %v1945 = vld [vmem:[#allocation8 + $0xb8] sm:$0xf]
        %v1946 = vld [vmem:[#allocation8 + $0xbc] sm:$0xf]
        %v1947 = vld [vmem:[#allocation8 + $0xc0] sm:$0xf]
        %v1948 = vld [vmem:[#allocation8 + $0xc4] sm:$0xf]
        %v1949 = vld [vmem:[#allocation8 + $0xc8] sm:$0xf]
        %v1950 = vld [vmem:[#allocation8 + $0xcc] sm:$0xf]
        %v1951 = vld [vmem:[#allocation8 + $0xd0] sm:$0xf]
        %v1952 = vld [vmem:[#allocation8 + $0xd4] sm:$0xf]
        %v1953 = vld [vmem:[#allocation8 + $0xd8] sm:$0xf]
        %v1954 = vld [vmem:[#allocation8 + $0xdc] sm:$0xf]
        %v1955 = vld [vmem:[#allocation8 + $0xe0] sm:$0xf]
        %v1956 = vld [vmem:[#allocation8 + $0xe4] sm:$0xf]
        %v1957 = vld [vmem:[#allocation8 + $0xe8] sm:$0xf]
        %v1958 = vld [vmem:[#allocation8 + $0xec] sm:$0xf]
        %v1959 = vld [vmem:[#allocation8 + $0xf0] sm:$0xf]
        %v1960 = vld [vmem:[#allocation8 + $0xf4] sm:$0xf]
        %v1961 = vld [vmem:[#allocation8 + $0xf8] sm:$0xf]
        %v1962 = vld [vmem:[#allocation8 + $0xfc] sm:$0xf]
        %v1963 = vld [vmem:[%s6] sm:$0x1]
        %v1965 = vlaneseq
        %v1966 = vshrl.u32 %v1965, 7
        %v1967 = vsub.s32 0, %v1966
        %v1968 = vrot.slane %v1963, %v1967
        %v2034 = vunpack.c.l.b16 %v1899
        %v2035 = vunpack.c.l.b16 %v1900
        %v2036 = vunpack.c.l.b16 %v1901
        %v2037 = vunpack.c.l.b16 %v1902
        %v2038 = vunpack.c.l.b16 %v1903
        %v2039 = vunpack.c.l.b16 %v1904
        %v2040 = vunpack.c.l.b16 %v1905
        %v2041 = vunpack.c.l.b16 %v1906
        %v2042 = vunpack.c.l.b16 %v1907
        %v2043 = vunpack.c.l.b16 %v1908
        %v2044 = vunpack.c.l.b16 %v1909
        %v2045 = vunpack.c.l.b16 %v1910
        %v2046 = vunpack.c.l.b16 %v1911
        %v2047 = vunpack.c.l.b16 %v1912
        %v2048 = vunpack.c.l.b16 %v1913
        %v2049 = vunpack.c.l.b16 %v1914
        %v2050 = vunpack.c.l.b16 %v1915
        %v2051 = vunpack.c.l.b16 %v1916
        %v2052 = vunpack.c.l.b16 %v1917
        %v2053 = vunpack.c.l.b16 %v1918
        %v2054 = vunpack.c.l.b16 %v1919
        %v2055 = vunpack.c.l.b16 %v1920
        %v2056 = vunpack.c.l.b16 %v1921
        %v2057 = vunpack.c.l.b16 %v1922
        %v2058 = vunpack.c.l.b16 %v1923
        %v2059 = vunpack.c.l.b16 %v1924
        %v2060 = vunpack.c.l.b16 %v1925
        %v2061 = vunpack.c.l.b16 %v1926
        %v2062 = vunpack.c.l.b16 %v1927
        %v2063 = vunpack.c.l.b16 %v1928
        %v2064 = vunpack.c.l.b16 %v1929
        %v2065 = vunpack.c.l.b16 %v1930
        %v2066 = vunpack.c.l.b16 %v1931
        %v2067 = vunpack.c.l.b16 %v1932
        %v2068 = vunpack.c.l.b16 %v1933
        %v2069 = vunpack.c.l.b16 %v1934
        %v2070 = vunpack.c.l.b16 %v1935
        %v2071 = vunpack.c.l.b16 %v1936
        %v2072 = vunpack.c.l.b16 %v1937
        %v2073 = vunpack.c.l.b16 %v1938
        %v2074 = vunpack.c.l.b16 %v1939
        %v2075 = vunpack.c.l.b16 %v1940
        %v2076 = vunpack.c.l.b16 %v1941
        %v2077 = vunpack.c.l.b16 %v1942
        %v2078 = vunpack.c.l.b16 %v1943
        %v2079 = vunpack.c.l.b16 %v1944
        %v2080 = vunpack.c.l.b16 %v1945
        %v2081 = vunpack.c.l.b16 %v1946
        %v2082 = vunpack.c.l.b16 %v1947
        %v2083 = vunpack.c.l.b16 %v1948
        %v2084 = vunpack.c.l.b16 %v1949
        %v2085 = vunpack.c.l.b16 %v1950
        %v2086 = vunpack.c.l.b16 %v1951
        %v2087 = vunpack.c.l.b16 %v1952
        %v2088 = vunpack.c.l.b16 %v1953
        %v2089 = vunpack.c.l.b16 %v1954
        %v2090 = vunpack.c.l.b16 %v1955
        %v2091 = vunpack.c.l.b16 %v1956
        %v2092 = vunpack.c.l.b16 %v1957
        %v2093 = vunpack.c.l.b16 %v1958
        %v2094 = vunpack.c.l.b16 %v1959
        %v2095 = vunpack.c.l.b16 %v1960
        %v2096 = vunpack.c.l.b16 %v1961
        %v2097 = vunpack.c.l.b16 %v1962
        %v2098 = vpack.c.b16 %v2035, %v2034
        %v2099 = vpack.c.b16 %v2037, %v2036
        %v2100 = vpack.c.b16 %v2039, %v2038
        %v2101 = vpack.c.b16 %v2041, %v2040
        %v2102 = vpack.c.b16 %v2043, %v2042
        %v2103 = vpack.c.b16 %v2045, %v2044
        %v2104 = vpack.c.b16 %v2047, %v2046
        %v2105 = vpack.c.b16 %v2049, %v2048
        %v2106 = vpack.c.b16 %v2051, %v2050
        %v2107 = vpack.c.b16 %v2053, %v2052
        %v2108 = vpack.c.b16 %v2055, %v2054
        %v2109 = vpack.c.b16 %v2057, %v2056
        %v2110 = vpack.c.b16 %v2059, %v2058
        %v2111 = vpack.c.b16 %v2061, %v2060
        %v2112 = vpack.c.b16 %v2063, %v2062
        %v2113 = vpack.c.b16 %v2065, %v2064
        %v2114 = vpack.c.b16 %v2067, %v2066
        %v2115 = vpack.c.b16 %v2069, %v2068
        %v2116 = vpack.c.b16 %v2071, %v2070
        %v2117 = vpack.c.b16 %v2073, %v2072
        %v2118 = vpack.c.b16 %v2075, %v2074
        %v2119 = vpack.c.b16 %v2077, %v2076
        %v2120 = vpack.c.b16 %v2079, %v2078
        %v2121 = vpack.c.b16 %v2081, %v2080
        %v2122 = vpack.c.b16 %v2083, %v2082
        %v2123 = vpack.c.b16 %v2085, %v2084
        %v2124 = vpack.c.b16 %v2087, %v2086
        %v2125 = vpack.c.b16 %v2089, %v2088
        %v2126 = vpack.c.b16 %v2091, %v2090
        %v2127 = vpack.c.b16 %v2093, %v2092
        %v2128 = vpack.c.b16 %v2095, %v2094
        %v2129 = vpack.c.b16 %v2097, %v2096
        %2162 = vmatprep.subr.bf16.mxu0 0
        %2163 = vmatpush1.bf16.msra.mxu0 %v2098
        %2164 = vmatprep.subr.bf16.mxu0 0
        %2165 = vmatpush1.bf16.msra.mxu0 %v2099
        %2166 = vmatprep.subr.bf16.mxu0 0
        %2167 = vmatpush1.bf16.msra.mxu0 %v2100
        %2168 = vmatprep.subr.bf16.mxu0 0
        %2169 = vmatpush1.bf16.msra.mxu0 %v2101
        %2170 = vmatprep.subr.bf16.mxu0 0
        %2171 = vmatpush1.bf16.msra.mxu0 %v2102
        %2172 = vmatprep.subr.bf16.mxu0 0
        %2173 = vmatpush1.bf16.msra.mxu0 %v2103
        %2174 = vmatprep.subr.bf16.mxu0 0
        %2175 = vmatpush1.bf16.msra.mxu0 %v2104
        %2176 = vmatprep.subr.bf16.mxu0 0
        %2177 = vmatpush1.bf16.msra.mxu0 %v2105
        %2178 = vmatprep.subr.bf16.mxu0 0
        %2179 = vmatpush1.bf16.msra.mxu0 %v2106
        %2180 = vmatprep.subr.bf16.mxu0 0
        %2181 = vmatpush1.bf16.msra.mxu0 %v2107
        %2182 = vmatprep.subr.bf16.mxu0 0
        %2183 = vmatpush1.bf16.msra.mxu0 %v2108
        %2184 = vmatprep.subr.bf16.mxu0 0
        %2185 = vmatpush1.bf16.msra.mxu0 %v2109
        %2186 = vmatprep.subr.bf16.mxu0 0
        %2187 = vmatpush1.bf16.msra.mxu0 %v2110
        %2188 = vmatprep.subr.bf16.mxu0 0
        %2189 = vmatpush1.bf16.msra.mxu0 %v2111
        %2190 = vmatprep.subr.bf16.mxu0 0
        %2191 = vmatpush1.bf16.msra.mxu0 %v2112
        %2192 = vmatprep.subr.bf16.mxu0 0
        %2193 = vmatpush1.bf16.msra.mxu0 %v2113
        %2194 = vmatprep.mubr.bf16.mxu0 %v1896
        %2195 = vmatmul.mubr.bf16.gmra.mrb[0].mxu0 %v1895
        %v2196 = vpop.f32.mrb[0].mxu0
        %v2197 = vadd.f32 %v1968, %v2196
        %v2198 = vpop.f32.mrb[0].mxu0
        %v2199 = vpop.f32.mrb[0].mxu0
        %v2200 = vadd.f32 %v1968, %v2199
        %v2201 = vpop.f32.mrb[0].mxu0
        %2202 = vdwg.mxu0
        %2203 = vmatprep.subr.bf16.mxu0 0
        %2204 = vmatpush1.bf16.msra.mxu0 %v2114
        %2205 = vmatprep.subr.bf16.mxu0 0
        %2206 = vmatpush1.bf16.msra.mxu0 %v2115
        %2207 = vmatprep.subr.bf16.mxu0 0
        %2208 = vmatpush1.bf16.msra.mxu0 %v2116
        %2209 = vmatprep.subr.bf16.mxu0 0
        %2210 = vmatpush1.bf16.msra.mxu0 %v2117
        %2211 = vmatprep.subr.bf16.mxu0 0
        %2212 = vmatpush1.bf16.msra.mxu0 %v2118
        %2213 = vmatprep.subr.bf16.mxu0 0
        %2214 = vmatpush1.bf16.msra.mxu0 %v2119
        %2215 = vmatprep.subr.bf16.mxu0 0
        %2216 = vmatpush1.bf16.msra.mxu0 %v2120
        %2217 = vmatprep.subr.bf16.mxu0 0
        %2218 = vmatpush1.bf16.msra.mxu0 %v2121
        %2219 = vmatprep.subr.bf16.mxu0 0
        %2220 = vmatpush1.bf16.msra.mxu0 %v2122
        %2221 = vmatprep.subr.bf16.mxu0 0
        %2222 = vmatpush1.bf16.msra.mxu0 %v2123
        %2223 = vmatprep.subr.bf16.mxu0 0
        %2224 = vmatpush1.bf16.msra.mxu0 %v2124
        %2225 = vmatprep.subr.bf16.mxu0 0
        %2226 = vmatpush1.bf16.msra.mxu0 %v2125
        %2227 = vmatprep.subr.bf16.mxu0 0
        %2228 = vmatpush1.bf16.msra.mxu0 %v2126
        %2229 = vmatprep.subr.bf16.mxu0 0
        %2230 = vmatpush1.bf16.msra.mxu0 %v2127
        %2231 = vmatprep.subr.bf16.mxu0 0
        %2232 = vmatpush1.bf16.msra.mxu0 %v2128
        %2233 = vmatprep.subr.bf16.mxu0 0
        %2234 = vmatpush1.bf16.msra.mxu0 %v2129
        %2235 = vmatprep.mubr.bf16.mxu0 %v1898
        %2236 = vmatmul.mubr.bf16.gmra.mrb[0].mxu0 %v1897
        %v2237 = vpop.f32.mrb[0].mxu0
        %v2238 = vadd.f32 %v2197, %v2237
        %v2239 = vpop.f32.mrb[0].mxu0
        %v2240 = vpop.f32.mrb[0].mxu0
        %v2241 = vadd.f32 %v2200, %v2240
        %v2242 = vpop.f32.mrb[0].mxu0
        %2243 = vdwg.mxu0
        %2244 = vst [vmem:[%s341] sm:$0xff] %v2238
        %2245 = vst [vmem:[%s341 + $0x8] sm:$0xff] %v2241
        %s2246 = sand.u32 %s186, 1
        %s2247 = scalar_lea.sflag [#allocation4], %s2246
        %s2248 = sand.u32 %s186, 1
        %s2249 = smul.addr %s2248, 16
        %s2250 = scalar_lea.vmem [#allocation10], %s2249
        // Predicated region
        $region65: #{tpu_custom_call.1} parent=47 // pred_check
          %p2251 = pneg %p196
        $region66: #{tpu_custom_call.1} parent=47 // pred_check_branch
          %2253 = sbr.rel (%p2251) target = $region68
        $region67: #{tpu_custom_call.1} parent=47 // pred_region
          %s2254 = smul.u32 2, %s26
          %s2256 = ssub.s32 256, 256
          %2257 = vsyncadd %s2247, %s2256
          %s2258 = smul.addr %s2254, 128
          %s2259 = scalar_lea.hbm %s7, %s2258
          %s2260 = sshll.u32 %s2250, 4
          %s2261 = int_to_ptr.vmem [resolvable:$true] %s2260
          %2266 = dma.vmem_to_hbm [thread:$0]  %s2261, 256, %s2259, %s2247, 128, 128, 8
        $region68: #{tpu_custom_call.1} parent=47 // pred_fallthru
          _
      $region48: #{tpu_custom_call.1} parent=5 // pred_fallthru
        _
      %p2267 = scmp.le.s32.totalorder 2, %s21
      // Predicated region
      $region69: #{tpu_custom_call.1} parent=5 // pred_check
        %p2268 = pneg %p2267
      $region70: #{tpu_custom_call.1} parent=5 // pred_check_branch
        %2270 = sbr.rel (%p2268) target = $region72
      $region71: #{tpu_custom_call.1} parent=5 // pred_region
        %s2271 = ssub.s32 %s21, 2
        // Predicated region
        $region73: #{tpu_custom_call.1} parent=71 // pred_check
          %p2272 = pneg %p202
        $region74: #{tpu_custom_call.1} parent=71 // pred_check_branch
          %2274 = sbr.rel (%p2272) target = $region76
        $region75: #{tpu_custom_call.1} parent=71 // pred_region
          %s2275 = sand.u32 %s187, 1
          %s2276 = scalar_lea.sflag [#allocation4], %s2275
          %s2277 = sand.u32 %s187, 1
          %s2278 = smul.addr %s2277, 16
          %s2279 = scalar_lea.vmem [#allocation10], %s2278
          %2280 = dma.done %s2276, 256
        $region76: #{tpu_custom_call.1} parent=71 // pred_fallthru
          _
      $region72: #{tpu_custom_call.1} parent=5 // pred_fallthru
        _
    $region6: #{tpu_custom_call.1} parent=1 // loop_footer
      %s25 = sadd.s32 1, %s21
    $region7: #{tpu_custom_call.1} parent=1 // loop_footer_branch
      %20 = sbr.rel target = $region3
    $region8: #{tpu_custom_call.1} parent=1 // loop_exit
      _
    %2281 = vsyncpa [#allocation3], 1
    %s2282 = scalar_lea.sflag [#allocation3], 1
    %2283 = vsyncpa %s2282, 1
    %2284 = vsyncpa [#allocation6], 1
    %2285 = vsyncpa [#allocation9], 1
    %2286 = vsyncpa [#allocation4], 1
    %s2287 = scalar_lea.sflag [#allocation4], 1
    %2288 = vsyncpa %s2287, 1

</llo_original>
